<compile_context>
chip_gen: v7x
topology: tpu7x:2x2x1
jax: 0.10.0
libtpu: 0.0.40
codegen_flags: <defaults>
</compile_context>

<pallas_src>
import functools

import jax
import jax.numpy as jnp
from jax.experimental import pallas as pl
from jax.experimental.pallas import tpu as pltpu


# ---------------------------------------------------------------------------
# Layer-dimension derivation (replicates the module constructor's float math).
# ---------------------------------------------------------------------------
def wide_tanh_layer_dims(input_dim, scale_up_factor=15, layer_number=6):
    """(fan_in, fan_out) of every Linear in WideTanhNetwork, in order.
    A Tanh follows every Linear except the last one."""
    init_output_dim = input_dim * scale_up_factor
    dims = [(int(input_dim), int(init_output_dim))]
    starting_dim, end_dim = init_output_dim, 1
    dim_step_size = (end_dim - starting_dim) / layer_number
    last_out_dim = starting_dim
    next_out_dim = starting_dim + dim_step_size
    end_cond = (lambda d: d < end_dim) if end_dim > starting_dim else (lambda d: d > end_dim)
    while end_cond(next_out_dim):
        dims.append((int(last_out_dim), int(next_out_dim)))
        last_out_dim = next_out_dim
        next_out_dim = last_out_dim + dim_step_size
    dims.append((int(last_out_dim), 1))
    return dims


# ---------------------------------------------------------------------------
# Kernel: the whole MLP hot path for one batch tile, batch on the lane axis.
# ---------------------------------------------------------------------------
def wide_tanh_kernel(tail_ref, x_ref, *refs, num_chains):
    """tail_ref : SMEM (2,) f32 = [w, b] of the final Linear(1,1) (scalar FMA).
    x_ref      : VMEM (d, batch_tile) f32, batch on lanes.
    refs       : w0,b0, ..., w6,b6 as (out,in)/(out,1) VMEM blocks, then o_ref."""
    o_ref = refs[-1]
    params = refs[:-1]
    n_layers = len(params) // 2
    bt = x_ref.shape[1]
    cw = bt // num_chains  # chain width (multiple of 128 when num_chains == 2)

    # Two independent dependency chains -> MXU of one half overlaps the
    # tanh/bias of the other half instead of stalling on the result FIFO.
    hs = [x_ref[:, c * cw:(c + 1) * cw] for c in range(num_chains)]
    for i in range(n_layers):
        w = params[2 * i][...]        # (out, in) f32
        b = params[2 * i + 1][...]    # (out, 1)  f32 -> broadcasts over lanes (batch)
        hs = [jnp.tanh(jnp.dot(w, h, preferred_element_type=jnp.float32) + b)
              for h in hs]
        # NOTE: tanh is kept f32 (safe on v5e's f32-only VPU/EUP; accurate everywhere).
        # TODO(synk): if profiling shows the EUP binds on v6e/v7x, compute tanh in bf16.

    # Final Linear(1,1): out = w * h + b on the VPU (no 1x1 MXU push / drain).
    w_last = tail_ref[0]
    b_last = tail_ref[1]
    for c in range(num_chains):
        o_ref[:, c * cw:(c + 1) * cw] = (hs[c] * w_last + b_last).astype(o_ref.dtype)


# ---------------------------------------------------------------------------
# Wrapper
# ---------------------------------------------------------------------------
def _pick_batch_tile(n, max_tile=2048):
    if n <= 128:
        return 128
    # >= 2 grid steps (keeps both v7x TensorCores busy); multiple of 256 so the
    # in-kernel half-chains stay 128-lane aligned; capped at 2048 to amortize
    # the ~0.35us per-grid-step overhead without blowing up activation spill.
    tile = pl.cdiv(pl.cdiv(n, 2), 256) * 256
    return int(min(tile, max_tile))


def wide_tanh_network(x, params, *, batch_tile=None):
    n, d = x.shape
    assert d == params[0][0].shape[0]

    if batch_tile is None:
        batch_tile = _pick_batch_tile(n)
    batch_tile = max(128, (int(batch_tile) // 128) * 128)      # lane-aligned tiles
    num_chains = 2 if batch_tile % 256 == 0 else 1

    n_pad = int(pl.cdiv(n, batch_tile)) * batch_tile

    # Batch on the lane axis: (n, d) -> (d, n_pad).  Padded columns are zeros and
    # are sliced off below (harmless: no batch-wise reduction / output aliasing).
    x_t = jnp.transpose(x.astype(jnp.float32))
    if n_pad != n:
        x_t = jnp.pad(x_t, ((0, 0), (0, n_pad - n)))

    # All layers but the degenerate final Linear(1,1) run on the MXU.  Weights are
    # transposed once in the wrapper to (out, in); biases become (out, 1) columns.
    flat, flat_specs = [], []
    for w, b in params[:-1]:
        w_t = jnp.asarray(w, jnp.float32).T           # (out, in)
        b_t = jnp.asarray(b, jnp.float32).reshape(-1, 1)  # (out, 1)
        flat.extend([w_t, b_t])
        # Full-array blocks, constant index_map: DMA'd into VMEM once, revisited
        # every grid step (no per-step re-DMA).
        # TODO(synk): pipeline_mode=pl.Buffered(1) would drop the duplicate ~120KiB
        # buffer; skipped as it is negligible at these sizes.
        flat_specs.append(pl.BlockSpec(w_t.shape, lambda i, *_: (0, 0)))
        flat_specs.append(pl.BlockSpec(b_t.shape, lambda i, *_: (0, 0)))

    w_last, b_last = params[-1]                       # the (1,1) Linear
    tail = jnp.stack([jnp.asarray(w_last, jnp.float32).reshape(()),
                      jnp.asarray(b_last, jnp.float32).reshape(())])  # (2,) -> SMEM

    # Advisory cost estimate for XLA's scheduler.
    flops = 2 * n_pad * sum(w.shape[0] * w.shape[1] for w, _ in params[:-1]) + 2 * n_pad
    transcendentals = n_pad * sum(w.shape[1] for w, _ in params[:-1])
    bytes_accessed = (x_t.size * 4 + n_pad * jnp.dtype(x.dtype).itemsize
                      + sum(a.size * 4 for a in flat) + tail.size * 4)

    kernel = functools.partial(wide_tanh_kernel, num_chains=num_chains)

    out = pl.pallas_call(
        kernel,
        out_shape=jax.ShapeDtypeStruct((1, n_pad), x.dtype),
        grid_spec=pltpu.PrefetchScalarGridSpec(
            num_scalar_prefetch=1,                     # tail (w,b of Linear(1,1)) -> SMEM
            grid=(n_pad // batch_tile,),
            in_specs=[pl.BlockSpec((d, batch_tile), lambda i, *_: (0, i))] + flat_specs,
            out_specs=pl.BlockSpec((1, batch_tile), lambda i, *_: (0, i)),
        ),
        compiler_params=pltpu.CompilerParams(
            dimension_semantics=("parallel",)),
        cost_estimate=pl.CostEstimate(
            flops=int(flops),
            transcendentals=int(transcendentals),
            bytes_accessed=int(bytes_accessed)),
    )(tail, x_t, *flat)

    return out[0, :n][:, None]


# ---------------------------------------------------------------------------
# Params + pure-f32 reference
# ---------------------------------------------------------------------------
def make_params(key, dims):
    """PyTorch-style U(-1/sqrt(fan_in), 1/sqrt(fan_in)) init; W stored (in, out)."""
    params = []
    for fan_in, fan_out in dims:
        key, kw, kb = jax.random.split(key, 3)
        bound = 1.0 / float(fan_in) ** 0.5
        w = jax.random.uniform(kw, (fan_in, fan_out), jnp.float32, -bound, bound)
        b = jax.random.uniform(kb, (1, fan_out), jnp.float32, -bound, bound)
        params.append((w, b))
    return params


def reference(x, params):
    """Pure-f32 reference matching the PyTorch module semantics
    (Tanh after every Linear except the last)."""
    h = x.astype(jnp.float32)
    n = len(params)
    for i, (w, b) in enumerate(params):
        z = jnp.dot(h, w) + b
        h = z if i == n - 1 else jnp.tanh(z)
    return h.astype(x.dtype)


if __name__ == "__main__":
    key = jax.random.PRNGKey(0)
    kx, kp = jax.random.split(key)

    input_dim = 8
    dims = wide_tanh_layer_dims(input_dim)   # [(8,120),(120,100),...,(20,1),(1,1)]
    params = make_params(kp, dims)

    batch = 16
    x = jax.random.normal(kx, (batch, input_dim), jnp.float32)

    y = wide_tanh_network(x, params)         # tile=128, grid=(1,) for this tiny batch
    jax.block_until_ready(y)

    y_ref = reference(x, params)
    assert y.shape == (batch, 1)
    assert jnp.allclose(y, y_ref, atol=2e-3, rtol=2e-3), "mismatch vs f32 reference"

    print("KERNEL_OK")
</pallas_src>

<mosaic_0001>
module attributes {stable_mosaic.version = 11 : i64} {
  func.func @wide_tanh_kernel(%arg0: i32, %arg1: memref<2xf32, #tpu.memory_space<smem>>, %arg2: memref<8x128xf32, #tpu.memory_space<vmem>>, %arg3: memref<120x8xf32, #tpu.memory_space<vmem>>, %arg4: memref<120x1xf32, #tpu.memory_space<vmem>>, %arg5: memref<100x120xf32, #tpu.memory_space<vmem>>, %arg6: memref<100x1xf32, #tpu.memory_space<vmem>>, %arg7: memref<80x100xf32, #tpu.memory_space<vmem>>, %arg8: memref<80x1xf32, #tpu.memory_space<vmem>>, %arg9: memref<60x80xf32, #tpu.memory_space<vmem>>, %arg10: memref<60x1xf32, #tpu.memory_space<vmem>>, %arg11: memref<40x60xf32, #tpu.memory_space<vmem>>, %arg12: memref<40x1xf32, #tpu.memory_space<vmem>>, %arg13: memref<20x40xf32, #tpu.memory_space<vmem>>, %arg14: memref<20x1xf32, #tpu.memory_space<vmem>>, %arg15: memref<1x20xf32, #tpu.memory_space<vmem>>, %arg16: memref<1x1xf32, #tpu.memory_space<vmem>>, %arg17: memref<1x128xf32, #tpu.memory_space<vmem>>) attributes {dimension_semantics = [#tpu.dimension_semantics<parallel>], iteration_bounds = array<i64: 1>, scalar_prefetch = 1 : i64, scratch_operands = 0 : i64, tpu.core_type = #tpu.core_type<tc>, window_params = [{transform_indices = @transform_0, window_bounds = array<i64: 8, 128>}, {pipeline_mode = #tpu.pipeline_mode<synchronous>, transform_indices = @transform_1, window_bounds = array<i64: 120, 8>}, {pipeline_mode = #tpu.pipeline_mode<synchronous>, transform_indices = @transform_2, window_bounds = array<i64: 120, 1>}, {pipeline_mode = #tpu.pipeline_mode<synchronous>, transform_indices = @transform_3, window_bounds = array<i64: 100, 120>}, {pipeline_mode = #tpu.pipeline_mode<synchronous>, transform_indices = @transform_4, window_bounds = array<i64: 100, 1>}, {pipeline_mode = #tpu.pipeline_mode<synchronous>, transform_indices = @transform_5, window_bounds = array<i64: 80, 100>}, {pipeline_mode = #tpu.pipeline_mode<synchronous>, transform_indices = @transform_6, window_bounds = array<i64: 80, 1>}, {pipeline_mode = #tpu.pipeline_mode<synchronous>, transform_indices = @transform_7, window_bounds = array<i64: 60, 80>}, {pipeline_mode = #tpu.pipeline_mode<synchronous>, transform_indices = @transform_8, window_bounds = array<i64: 60, 1>}, {pipeline_mode = #tpu.pipeline_mode<synchronous>, transform_indices = @transform_9, window_bounds = array<i64: 40, 60>}, {pipeline_mode = #tpu.pipeline_mode<synchronous>, transform_indices = @transform_10, window_bounds = array<i64: 40, 1>}, {pipeline_mode = #tpu.pipeline_mode<synchronous>, transform_indices = @transform_11, window_bounds = array<i64: 20, 40>}, {pipeline_mode = #tpu.pipeline_mode<synchronous>, transform_indices = @transform_12, window_bounds = array<i64: 20, 1>}, {pipeline_mode = #tpu.pipeline_mode<synchronous>, transform_indices = @transform_13, window_bounds = array<i64: 1, 20>}, {pipeline_mode = #tpu.pipeline_mode<synchronous>, transform_indices = @transform_14, window_bounds = array<i64: 1, 1>}, {transform_indices = @transform_15, window_bounds = array<i64: 1, 128>}]} {
    %c0 = arith.constant 0 : index
    %c0_0 = arith.constant 0 : index
    %0 = vector.load %arg2[%c0, %c0_0] : memref<8x128xf32, #tpu.memory_space<vmem>>, vector<8x128xf32>
    %c0_1 = arith.constant 0 : index
    %c0_2 = arith.constant 0 : index
    %1 = vector.load %arg3[%c0_1, %c0_2] : memref<120x8xf32, #tpu.memory_space<vmem>>, vector<120x8xf32>
    %c0_3 = arith.constant 0 : index
    %c0_4 = arith.constant 0 : index
    %2 = vector.load %arg4[%c0_3, %c0_4] : memref<120x1xf32, #tpu.memory_space<vmem>>, vector<120x1xf32>
    %cst = arith.constant dense<0.000000e+00> : vector<120x128xf32>
    %3 = tpu.matmul %1, %0, %cst {dimension_numbers = #tpu.dot_dimension_numbers<[1], [0], [0], [1], [0, 0, 1, 1], [], []>} : vector<120x8xf32>, vector<8x128xf32>, vector<120x128xf32> -> vector<120x128xf32>
    %4 = vector.broadcast %2 : vector<120x1xf32> to vector<120x128xf32>
    %5 = arith.addf %3, %4 : vector<120x128xf32>
    %6 = math.tanh %5 : vector<120x128xf32>
    %c0_5 = arith.constant 0 : index
    %c0_6 = arith.constant 0 : index
    %7 = vector.load %arg5[%c0_5, %c0_6] : memref<100x120xf32, #tpu.memory_space<vmem>>, vector<100x120xf32>
    %c0_7 = arith.constant 0 : index
    %c0_8 = arith.constant 0 : index
    %8 = vector.load %arg6[%c0_7, %c0_8] : memref<100x1xf32, #tpu.memory_space<vmem>>, vector<100x1xf32>
    %cst_9 = arith.constant dense<0.000000e+00> : vector<100x128xf32>
    %9 = tpu.matmul %7, %6, %cst_9 {dimension_numbers = #tpu.dot_dimension_numbers<[1], [0], [0], [1], [0, 0, 1, 1], [], []>} : vector<100x120xf32>, vector<120x128xf32>, vector<100x128xf32> -> vector<100x128xf32>
    %10 = vector.broadcast %8 : vector<100x1xf32> to vector<100x128xf32>
    %11 = arith.addf %9, %10 : vector<100x128xf32>
    %12 = math.tanh %11 : vector<100x128xf32>
    %c0_10 = arith.constant 0 : index
    %c0_11 = arith.constant 0 : index
    %13 = vector.load %arg7[%c0_10, %c0_11] : memref<80x100xf32, #tpu.memory_space<vmem>>, vector<80x100xf32>
    %c0_12 = arith.constant 0 : index
    %c0_13 = arith.constant 0 : index
    %14 = vector.load %arg8[%c0_12, %c0_13] : memref<80x1xf32, #tpu.memory_space<vmem>>, vector<80x1xf32>
    %cst_14 = arith.constant dense<0.000000e+00> : vector<80x128xf32>
    %15 = tpu.matmul %13, %12, %cst_14 {dimension_numbers = #tpu.dot_dimension_numbers<[1], [0], [0], [1], [0, 0, 1, 1], [], []>} : vector<80x100xf32>, vector<100x128xf32>, vector<80x128xf32> -> vector<80x128xf32>
    %16 = vector.broadcast %14 : vector<80x1xf32> to vector<80x128xf32>
    %17 = arith.addf %15, %16 : vector<80x128xf32>
    %18 = math.tanh %17 : vector<80x128xf32>
    %c0_15 = arith.constant 0 : index
    %c0_16 = arith.constant 0 : index
    %19 = vector.load %arg9[%c0_15, %c0_16] : memref<60x80xf32, #tpu.memory_space<vmem>>, vector<60x80xf32>
    %c0_17 = arith.constant 0 : index
    %c0_18 = arith.constant 0 : index
    %20 = vector.load %arg10[%c0_17, %c0_18] : memref<60x1xf32, #tpu.memory_space<vmem>>, vector<60x1xf32>
    %cst_19 = arith.constant dense<0.000000e+00> : vector<60x128xf32>
    %21 = tpu.matmul %19, %18, %cst_19 {dimension_numbers = #tpu.dot_dimension_numbers<[1], [0], [0], [1], [0, 0, 1, 1], [], []>} : vector<60x80xf32>, vector<80x128xf32>, vector<60x128xf32> -> vector<60x128xf32>
    %22 = vector.broadcast %20 : vector<60x1xf32> to vector<60x128xf32>
    %23 = arith.addf %21, %22 : vector<60x128xf32>
    %24 = math.tanh %23 : vector<60x128xf32>
    %c0_20 = arith.constant 0 : index
    %c0_21 = arith.constant 0 : index
    %25 = vector.load %arg11[%c0_20, %c0_21] : memref<40x60xf32, #tpu.memory_space<vmem>>, vector<40x60xf32>
    %c0_22 = arith.constant 0 : index
    %c0_23 = arith.constant 0 : index
    %26 = vector.load %arg12[%c0_22, %c0_23] : memref<40x1xf32, #tpu.memory_space<vmem>>, vector<40x1xf32>
    %cst_24 = arith.constant dense<0.000000e+00> : vector<40x128xf32>
    %27 = tpu.matmul %25, %24, %cst_24 {dimension_numbers = #tpu.dot_dimension_numbers<[1], [0], [0], [1], [0, 0, 1, 1], [], []>} : vector<40x60xf32>, vector<60x128xf32>, vector<40x128xf32> -> vector<40x128xf32>
    %28 = vector.broadcast %26 : vector<40x1xf32> to vector<40x128xf32>
    %29 = arith.addf %27, %28 : vector<40x128xf32>
    %30 = math.tanh %29 : vector<40x128xf32>
    %c0_25 = arith.constant 0 : index
    %c0_26 = arith.constant 0 : index
    %31 = vector.load %arg13[%c0_25, %c0_26] : memref<20x40xf32, #tpu.memory_space<vmem>>, vector<20x40xf32>
    %c0_27 = arith.constant 0 : index
    %c0_28 = arith.constant 0 : index
    %32 = vector.load %arg14[%c0_27, %c0_28] : memref<20x1xf32, #tpu.memory_space<vmem>>, vector<20x1xf32>
    %cst_29 = arith.constant dense<0.000000e+00> : vector<20x128xf32>
    %33 = tpu.matmul %31, %30, %cst_29 {dimension_numbers = #tpu.dot_dimension_numbers<[1], [0], [0], [1], [0, 0, 1, 1], [], []>} : vector<20x40xf32>, vector<40x128xf32>, vector<20x128xf32> -> vector<20x128xf32>
    %34 = vector.broadcast %32 : vector<20x1xf32> to vector<20x128xf32>
    %35 = arith.addf %33, %34 : vector<20x128xf32>
    %36 = math.tanh %35 : vector<20x128xf32>
    %c0_30 = arith.constant 0 : index
    %c0_31 = arith.constant 0 : index
    %37 = vector.load %arg15[%c0_30, %c0_31] : memref<1x20xf32, #tpu.memory_space<vmem>>, vector<1x20xf32>
    %c0_32 = arith.constant 0 : index
    %c0_33 = arith.constant 0 : index
    %38 = vector.load %arg16[%c0_32, %c0_33] : memref<1x1xf32, #tpu.memory_space<vmem>>, vector<1x1xf32>
    %cst_34 = arith.constant dense<0.000000e+00> : vector<1x128xf32>
    %39 = tpu.matmul %37, %36, %cst_34 {dimension_numbers = #tpu.dot_dimension_numbers<[1], [0], [0], [1], [0, 0, 1, 1], [], []>} : vector<1x20xf32>, vector<20x128xf32>, vector<1x128xf32> -> vector<1x128xf32>
    %40 = vector.broadcast %38 : vector<1x1xf32> to vector<1x128xf32>
    %41 = arith.addf %39, %40 : vector<1x128xf32>
    %42 = math.tanh %41 : vector<1x128xf32>
    %c0_35 = arith.constant 0 : index
    %43 = memref.load %arg1[%c0_35] : memref<2xf32, #tpu.memory_space<smem>>
    %c1 = arith.constant 1 : index
    %44 = memref.load %arg1[%c1] : memref<2xf32, #tpu.memory_space<smem>>
    %45 = vector.broadcast %43 : f32 to vector<1x128xf32>
    %46 = arith.mulf %42, %45 : vector<1x128xf32>
    %47 = vector.broadcast %44 : f32 to vector<1x128xf32>
    %48 = arith.addf %46, %47 : vector<1x128xf32>
    %c0_36 = arith.constant 0 : index
    %c0_37 = arith.constant 0 : index
    %49 = vector.load %arg17[%c0_36, %c0_37] : memref<1x128xf32, #tpu.memory_space<vmem>>, vector<1x128xf32>
    tpu.vector_store %arg17[%c0_36, %c0_37], %48 {strides = array<i32>} : memref<1x128xf32, #tpu.memory_space<vmem>>, vector<1x128xf32>,
    return
  }
  func.func @transform_0(%arg0: i32, %arg1: memref<2xf32, #tpu.memory_space<smem>>) -> (i32, i32) {
    %c0_i32 = arith.constant 0 : i32
    %c0_i32_0 = arith.constant 0 : i32
    return %c0_i32, %arg0 : i32, i32
  }
  func.func @transform_1(%arg0: i32, %arg1: memref<2xf32, #tpu.memory_space<smem>>) -> (i32, i32) {
    %c0_i32 = arith.constant 0 : i32
    %c0_i32_0 = arith.constant 0 : i32
    %c0_i32_1 = arith.constant 0 : i32
    return %c0_i32, %c0_i32_0 : i32, i32
  }
  func.func @transform_2(%arg0: i32, %arg1: memref<2xf32, #tpu.memory_space<smem>>) -> (i32, i32) {
    %c0_i32 = arith.constant 0 : i32
    %c0_i32_0 = arith.constant 0 : i32
    %c0_i32_1 = arith.constant 0 : i32
    return %c0_i32, %c0_i32_0 : i32, i32
  }
  func.func @transform_3(%arg0: i32, %arg1: memref<2xf32, #tpu.memory_space<smem>>) -> (i32, i32) {
    %c0_i32 = arith.constant 0 : i32
    %c0_i32_0 = arith.constant 0 : i32
    %c0_i32_1 = arith.constant 0 : i32
    return %c0_i32, %c0_i32_0 : i32, i32
  }
  func.func @transform_4(%arg0: i32, %arg1: memref<2xf32, #tpu.memory_space<smem>>) -> (i32, i32) {
    %c0_i32 = arith.constant 0 : i32
    %c0_i32_0 = arith.constant 0 : i32
    %c0_i32_1 = arith.constant 0 : i32
    return %c0_i32, %c0_i32_0 : i32, i32
  }
  func.func @transform_5(%arg0: i32, %arg1: memref<2xf32, #tpu.memory_space<smem>>) -> (i32, i32) {
    %c0_i32 = arith.constant 0 : i32
    %c0_i32_0 = arith.constant 0 : i32
    %c0_i32_1 = arith.constant 0 : i32
    return %c0_i32, %c0_i32_0 : i32, i32
  }
  func.func @transform_6(%arg0: i32, %arg1: memref<2xf32, #tpu.memory_space<smem>>) -> (i32, i32) {
    %c0_i32 = arith.constant 0 : i32
    %c0_i32_0 = arith.constant 0 : i32
    %c0_i32_1 = arith.constant 0 : i32
    return %c0_i32, %c0_i32_0 : i32, i32
  }
  func.func @transform_7(%arg0: i32, %arg1: memref<2xf32, #tpu.memory_space<smem>>) -> (i32, i32) {
    %c0_i32 = arith.constant 0 : i32
    %c0_i32_0 = arith.constant 0 : i32
    %c0_i32_1 = arith.constant 0 : i32
    return %c0_i32, %c0_i32_0 : i32, i32
  }
  func.func @transform_8(%arg0: i32, %arg1: memref<2xf32, #tpu.memory_space<smem>>) -> (i32, i32) {
    %c0_i32 = arith.constant 0 : i32
    %c0_i32_0 = arith.constant 0 : i32
    %c0_i32_1 = arith.constant 0 : i32
    return %c0_i32, %c0_i32_0 : i32, i32
  }
  func.func @transform_9(%arg0: i32, %arg1: memref<2xf32, #tpu.memory_space<smem>>) -> (i32, i32) {
    %c0_i32 = arith.constant 0 : i32
    %c0_i32_0 = arith.constant 0 : i32
    %c0_i32_1 = arith.constant 0 : i32
    return %c0_i32, %c0_i32_0 : i32, i32
  }
  func.func @transform_10(%arg0: i32, %arg1: memref<2xf32, #tpu.memory_space<smem>>) -> (i32, i32) {
    %c0_i32 = arith.constant 0 : i32
    %c0_i32_0 = arith.constant 0 : i32
    %c0_i32_1 = arith.constant 0 : i32
    return %c0_i32, %c0_i32_0 : i32, i32
  }
  func.func @transform_11(%arg0: i32, %arg1: memref<2xf32, #tpu.memory_space<smem>>) -> (i32, i32) {
    %c0_i32 = arith.constant 0 : i32
    %c0_i32_0 = arith.constant 0 : i32
    %c0_i32_1 = arith.constant 0 : i32
    return %c0_i32, %c0_i32_0 : i32, i32
  }
  func.func @transform_12(%arg0: i32, %arg1: memref<2xf32, #tpu.memory_space<smem>>) -> (i32, i32) {
    %c0_i32 = arith.constant 0 : i32
    %c0_i32_0 = arith.constant 0 : i32
    %c0_i32_1 = arith.constant 0 : i32
    return %c0_i32, %c0_i32_0 : i32, i32
  }
  func.func @transform_13(%arg0: i32, %arg1: memref<2xf32, #tpu.memory_space<smem>>) -> (i32, i32) {
    %c0_i32 = arith.constant 0 : i32
    %c0_i32_0 = arith.constant 0 : i32
    %c0_i32_1 = arith.constant 0 : i32
    return %c0_i32, %c0_i32_0 : i32, i32
  }
  func.func @transform_14(%arg0: i32, %arg1: memref<2xf32, #tpu.memory_space<smem>>) -> (i32, i32) {
    %c0_i32 = arith.constant 0 : i32
    %c0_i32_0 = arith.constant 0 : i32
    %c0_i32_1 = arith.constant 0 : i32
    return %c0_i32, %c0_i32_0 : i32, i32
  }
  func.func @transform_15(%arg0: i32, %arg1: memref<2xf32, #tpu.memory_space<smem>>) -> (i32, i32) {
    %c0_i32 = arith.constant 0 : i32
    %c0_i32_0 = arith.constant 0 : i32
    return %c0_i32, %arg0 : i32, i32
  }
}

</mosaic_0001>

<llo_original>
// kernel: tpu_custom_call.1
$region0: #{tpu_custom_call.1}
  #allocation0 [shape = 'u32[]', space=smem, size = 0x4, offset = 0x4, fixed_abs, tag = 'smem constant byte address 0x4 - core index']
  #allocation1 [shape = 'u32[144,128]{1,0:T(1,128)}', space=vmem, size = 0x12000, scoped, tag = 'internal scratch']
  #allocation2 [shape = 's32[1]{0}', space=sflag, size = 0x4, scoped, tag = 'scoped memory for tpu_custom_call.1']
  #allocation3 [shape = 'u8[512]{0}', space=smem, size = 0x200, scoped, tag = 'prefetched SMEM operand 0']
  #allocation4 [shape = 'f32[1,1]{1,0:T(1,128)S(1)}', space=vmem, size = 0x200, scoped, tag = 'scoped memory for tpu_custom_call.1']
  %s0 = inlined_call_operand.vmem [shape: f32[2], index: 0, kind: input, shape index: {}]
  %s1 = inlined_call_operand.vmem [shape: f32[8,128], index: 1, kind: input, shape index: {}]
  %s2 = inlined_call_operand.vmem [shape: f32[120,8], index: 2, kind: input, shape index: {}]
  %s3 = inlined_call_operand.vmem [shape: f32[120,1], index: 3, kind: input, shape index: {}]
  %s4 = inlined_call_operand.vmem [shape: f32[100,120], index: 4, kind: input, shape index: {}]
  %s5 = inlined_call_operand.vmem [shape: f32[100,1], index: 5, kind: input, shape index: {}]
  %s6 = inlined_call_operand.vmem [shape: f32[80,100], index: 6, kind: input, shape index: {}]
  %s7 = inlined_call_operand.vmem [shape: f32[80,1], index: 7, kind: input, shape index: {}]
  %s8 = inlined_call_operand.vmem [shape: f32[60,80], index: 8, kind: input, shape index: {}]
  %s9 = inlined_call_operand.vmem [shape: f32[60,1], index: 9, kind: input, shape index: {}]
  %s10 = inlined_call_operand.vmem [shape: f32[40,60], index: 10, kind: input, shape index: {}]
  %s11 = inlined_call_operand.vmem [shape: f32[40,1], index: 11, kind: input, shape index: {}]
  %s12 = inlined_call_operand.vmem [shape: f32[20,40], index: 12, kind: input, shape index: {}]
  %s13 = inlined_call_operand.vmem [shape: f32[20,1], index: 13, kind: input, shape index: {}]
  %s14 = inlined_call_operand.vmem [shape: f32[1,20], index: 14, kind: input, shape index: {}]
  %s15 = inlined_call_operand.<no memory space> [shape: f32[1,1], index: 15, kind: input, shape index: {}]
  %s16 = inlined_call_operand.hbm [shape: f32[1,128], index: 16, kind: output, shape index: {}]
  %s17 = sld [smem:[#allocation0]]
  $region70: #{tpu_custom_call.1} parent=0
    _
  %s19 = ssub.s32 1, %s17
  %s20 = scalar_select 0, %s19, %s17
  %s21 = sshll.u32 %s0, 4
  %s22 = int_to_ptr.vmem [resolvable:$true] %s21
  %24 = dma.vmem_to_smem %s22, 16, [#allocation3], [#allocation2]
  %v25 = vstv %s15
  %26 = vst [vmem:[#allocation4] sm:$0x1] %v25
  %27 = dma.done [#allocation2], 16
  %28 = sfence
  $region1: #{tpu_custom_call.1} parent=0
    #allocation5 [shape = 'u8[512]{0}', space=vmem, size = 0x400, scoped, tag = 'output window, operand 0, single buffered']
    #allocation6 [shape = 's32[1]{0}', space=sflag, size = 0x4, scoped, tag = 'scoped memory for tpu_custom_call.1']
    %29 = vsyncpa [#allocation6], 0
    // Predicated region
    $region2: #{tpu_custom_call.1} parent=1 // pred_check
      _
    $region3: #{tpu_custom_call.1} parent=1 // pred_check_branch
      %31 = sbr.rel (0) target = $region5
    $region4: #{tpu_custom_call.1} parent=1 // pred_region
      _
    $region5: #{tpu_custom_call.1} parent=1 // pred_fallthru
      _
    // Predicated region
    $region6: #{tpu_custom_call.1} parent=1 // pred_check
      _
    $region7: #{tpu_custom_call.1} parent=1 // pred_check_branch
      %33 = sbr.rel (0) target = $region9
    $region8: #{tpu_custom_call.1} parent=1 // pred_region
      _
    $region9: #{tpu_custom_call.1} parent=1 // pred_fallthru
      _
    // Predicated region
    $region10: #{tpu_custom_call.1} parent=1 // pred_check
      _
    $region11: #{tpu_custom_call.1} parent=1 // pred_check_branch
      %35 = sbr.rel (0) target = $region13
    $region12: #{tpu_custom_call.1} parent=1 // pred_region
      _
    $region13: #{tpu_custom_call.1} parent=1 // pred_fallthru
      _
    // Predicated region
    $region14: #{tpu_custom_call.1} parent=1 // pred_check
      _
    $region15: #{tpu_custom_call.1} parent=1 // pred_check_branch
      %37 = sbr.rel (0) target = $region17
    $region16: #{tpu_custom_call.1} parent=1 // pred_region
      _
    $region17: #{tpu_custom_call.1} parent=1 // pred_fallthru
      _
    // Predicated region
    $region18: #{tpu_custom_call.1} parent=1 // pred_check
      _
    $region19: #{tpu_custom_call.1} parent=1 // pred_check_branch
      %39 = sbr.rel (0) target = $region21
    $region20: #{tpu_custom_call.1} parent=1 // pred_region
      _
    $region21: #{tpu_custom_call.1} parent=1 // pred_fallthru
      _
    // Predicated region
    $region22: #{tpu_custom_call.1} parent=1 // pred_check
      _
    $region23: #{tpu_custom_call.1} parent=1 // pred_check_branch
      %41 = sbr.rel (0) target = $region25
    $region24: #{tpu_custom_call.1} parent=1 // pred_region
      _
    $region25: #{tpu_custom_call.1} parent=1 // pred_fallthru
      _
    // Predicated region
    $region26: #{tpu_custom_call.1} parent=1 // pred_check
      _
    $region27: #{tpu_custom_call.1} parent=1 // pred_check_branch
      %43 = sbr.rel (0) target = $region29
    $region28: #{tpu_custom_call.1} parent=1 // pred_region
      _
    $region29: #{tpu_custom_call.1} parent=1 // pred_fallthru
      _
    // Predicated region
    $region30: #{tpu_custom_call.1} parent=1 // pred_check
      _
    $region31: #{tpu_custom_call.1} parent=1 // pred_check_branch
      %45 = sbr.rel (0) target = $region33
    $region32: #{tpu_custom_call.1} parent=1 // pred_region
      _
    $region33: #{tpu_custom_call.1} parent=1 // pred_fallthru
      _
    // Predicated region
    $region34: #{tpu_custom_call.1} parent=1 // pred_check
      _
    $region35: #{tpu_custom_call.1} parent=1 // pred_check_branch
      %47 = sbr.rel (0) target = $region37
    $region36: #{tpu_custom_call.1} parent=1 // pred_region
      _
    $region37: #{tpu_custom_call.1} parent=1 // pred_fallthru
      _
    // Predicated region
    $region38: #{tpu_custom_call.1} parent=1 // pred_check
      _
    $region39: #{tpu_custom_call.1} parent=1 // pred_check_branch
      %49 = sbr.rel (0) target = $region41
    $region40: #{tpu_custom_call.1} parent=1 // pred_region
      _
    $region41: #{tpu_custom_call.1} parent=1 // pred_fallthru
      _
    // Predicated region
    $region42: #{tpu_custom_call.1} parent=1 // pred_check
      _
    $region43: #{tpu_custom_call.1} parent=1 // pred_check_branch
      %51 = sbr.rel (0) target = $region45
    $region44: #{tpu_custom_call.1} parent=1 // pred_region
      _
    $region45: #{tpu_custom_call.1} parent=1 // pred_fallthru
      _
    // Predicated region
    $region46: #{tpu_custom_call.1} parent=1 // pred_check
      _
    $region47: #{tpu_custom_call.1} parent=1 // pred_check_branch
      %53 = sbr.rel (0) target = $region49
    $region48: #{tpu_custom_call.1} parent=1 // pred_region
      _
    $region49: #{tpu_custom_call.1} parent=1 // pred_fallthru
      _
    // Predicated region
    $region50: #{tpu_custom_call.1} parent=1 // pred_check
      _
    $region51: #{tpu_custom_call.1} parent=1 // pred_check_branch
      %55 = sbr.rel (0) target = $region53
    $region52: #{tpu_custom_call.1} parent=1 // pred_region
      _
    $region53: #{tpu_custom_call.1} parent=1 // pred_fallthru
      _
    // Predicated region
    $region54: #{tpu_custom_call.1} parent=1 // pred_check
      _
    $region55: #{tpu_custom_call.1} parent=1 // pred_check_branch
      %57 = sbr.rel (0) target = $region57
    $region56: #{tpu_custom_call.1} parent=1 // pred_region
      _
    $region57: #{tpu_custom_call.1} parent=1 // pred_fallthru
      _
    // Predicated region
    $region58: #{tpu_custom_call.1} parent=1 // pred_check
      _
    $region59: #{tpu_custom_call.1} parent=1 // pred_check_branch
      %59 = sbr.rel (0) target = $region61
    $region60: #{tpu_custom_call.1} parent=1 // pred_region
      _
    $region61: #{tpu_custom_call.1} parent=1 // pred_fallthru
      _
    %v60 = vld [vmem:[%s1] sm:$0xff]
    %v61 = vld [vmem:[%s2] sm:$0xff]
    %v62 = vld [vmem:[%s2 + $0x8] sm:$0xff]
    %v63 = vld [vmem:[%s2 + $0x10] sm:$0xff]
    %v64 = vld [vmem:[%s2 + $0x18] sm:$0xff]
    %v65 = vld [vmem:[%s2 + $0x20] sm:$0xff]
    %v66 = vld [vmem:[%s2 + $0x28] sm:$0xff]
    %v67 = vld [vmem:[%s2 + $0x30] sm:$0xff]
    %v68 = vld [vmem:[%s2 + $0x38] sm:$0xff]
    %v69 = vld [vmem:[%s2 + $0x40] sm:$0xff]
    %v70 = vld [vmem:[%s2 + $0x48] sm:$0xff]
    %v71 = vld [vmem:[%s2 + $0x50] sm:$0xff]
    %v72 = vld [vmem:[%s2 + $0x58] sm:$0xff]
    %v73 = vld [vmem:[%s2 + $0x60] sm:$0xff]
    %v74 = vld [vmem:[%s2 + $0x68] sm:$0xff]
    %v75 = vld [vmem:[%s2 + $0x70] sm:$0xff]
    %v76 = vld [vmem:[%s3] sm:$0xff]
    %v77 = vld [vmem:[%s3 + $0x8] sm:$0xff]
    %v78 = vld [vmem:[%s3 + $0x10] sm:$0xff]
    %v79 = vld [vmem:[%s3 + $0x18] sm:$0xff]
    %v80 = vld [vmem:[%s3 + $0x20] sm:$0xff]
    %v81 = vld [vmem:[%s3 + $0x28] sm:$0xff]
    %v82 = vld [vmem:[%s3 + $0x30] sm:$0xff]
    %v83 = vld [vmem:[%s3 + $0x38] sm:$0xff]
    %v84 = vld [vmem:[%s3 + $0x40] sm:$0xff]
    %v85 = vld [vmem:[%s3 + $0x48] sm:$0xff]
    %v86 = vld [vmem:[%s3 + $0x50] sm:$0xff]
    %v87 = vld [vmem:[%s3 + $0x58] sm:$0xff]
    %v88 = vld [vmem:[%s3 + $0x60] sm:$0xff]
    %v89 = vld [vmem:[%s3 + $0x68] sm:$0xff]
    %v90 = vld [vmem:[%s3 + $0x70] sm:$0xff]
    %92 = vset.pattern.permute.xlu0 0
    %93 = vperm.xlu0 %92, %v76
    %v94 = vpop.permute.xlu0 %93
    %97 = vset.pattern.permute.xlu0 0
    %98 = vperm.xlu0 %97, %v77
    %v99 = vpop.permute.xlu0 %98
    %102 = vset.pattern.permute.xlu0 0
    %103 = vperm.xlu0 %102, %v78
    %v104 = vpop.permute.xlu0 %103
    %107 = vset.pattern.permute.xlu0 0
    %108 = vperm.xlu0 %107, %v79
    %v109 = vpop.permute.xlu0 %108
    %112 = vset.pattern.permute.xlu0 0
    %113 = vperm.xlu0 %112, %v80
    %v114 = vpop.permute.xlu0 %113
    %117 = vset.pattern.permute.xlu0 0
    %118 = vperm.xlu0 %117, %v81
    %v119 = vpop.permute.xlu0 %118
    %122 = vset.pattern.permute.xlu0 0
    %123 = vperm.xlu0 %122, %v82
    %v124 = vpop.permute.xlu0 %123
    %127 = vset.pattern.permute.xlu0 0
    %128 = vperm.xlu0 %127, %v83
    %v129 = vpop.permute.xlu0 %128
    %132 = vset.pattern.permute.xlu0 0
    %133 = vperm.xlu0 %132, %v84
    %v134 = vpop.permute.xlu0 %133
    %137 = vset.pattern.permute.xlu0 0
    %138 = vperm.xlu0 %137, %v85
    %v139 = vpop.permute.xlu0 %138
    %142 = vset.pattern.permute.xlu0 0
    %143 = vperm.xlu0 %142, %v86
    %v144 = vpop.permute.xlu0 %143
    %147 = vset.pattern.permute.xlu0 0
    %148 = vperm.xlu0 %147, %v87
    %v149 = vpop.permute.xlu0 %148
    %152 = vset.pattern.permute.xlu0 0
    %153 = vperm.xlu0 %152, %v88
    %v154 = vpop.permute.xlu0 %153
    %157 = vset.pattern.permute.xlu0 0
    %158 = vperm.xlu0 %157, %v89
    %v159 = vpop.permute.xlu0 %158
    %162 = vset.pattern.permute.xlu0 0
    %163 = vperm.xlu0 %162, %v90
    %v164 = vpop.permute.xlu0 %163
    %vm166 = vcmask 64512
    %v168 = vsel %vm166, %v61, 0
    %v171 = vsel %vm166, %v62, 0
    %v174 = vsel %vm166, %v63, 0
    %v177 = vsel %vm166, %v64, 0
    %v180 = vsel %vm166, %v65, 0
    %v183 = vsel %vm166, %v66, 0
    %v186 = vsel %vm166, %v67, 0
    %v189 = vsel %vm166, %v68, 0
    %v192 = vsel %vm166, %v69, 0
    %v195 = vsel %vm166, %v70, 0
    %v198 = vsel %vm166, %v71, 0
    %v201 = vsel %vm166, %v72, 0
    %v204 = vsel %vm166, %v73, 0
    %v207 = vsel %vm166, %v74, 0
    %v210 = vsel %vm166, %v75, 0
    %212 = vmatprep.subr.mxu0 0.0
    %213 = vmatpush1.msra.mxu0 %v60
    %214 = vmatprep.subr.mxu0 0.0
    %215 = vmatpush1.msra.mxu0 0.0
    %216 = vmatprep.subr.mxu0 0.0
    %217 = vmatpush1.msra.mxu0 0.0
    %218 = vmatprep.subr.mxu0 0.0
    %219 = vmatpush1.msra.mxu0 0.0
    %220 = vmatprep.subr.mxu0 0.0
    %221 = vmatpush1.msra.mxu0 0.0
    %222 = vmatprep.subr.mxu0 0.0
    %223 = vmatpush1.msra.mxu0 0.0
    %224 = vmatprep.subr.mxu0 0.0
    %225 = vmatpush1.msra.mxu0 0.0
    %226 = vmatprep.subr.mxu0 0.0
    %227 = vmatpush1.msra.mxu0 0.0
    %228 = vmatprep.subr.mxu0 0.0
    %229 = vmatpush1.msra.mxu0 0.0
    %230 = vmatprep.subr.mxu0 0.0
    %231 = vmatpush1.msra.mxu0 0.0
    %232 = vmatprep.subr.mxu0 0.0
    %233 = vmatpush1.msra.mxu0 0.0
    %234 = vmatprep.subr.mxu0 0.0
    %235 = vmatpush1.msra.mxu0 0.0
    %236 = vmatprep.subr.mxu0 0.0
    %237 = vmatpush1.msra.mxu0 0.0
    %238 = vmatprep.subr.mxu0 0.0
    %239 = vmatpush1.msra.mxu0 0.0
    %240 = vmatprep.subr.mxu0 0.0
    %241 = vmatpush1.msra.mxu0 0.0
    %242 = vmatprep.subr.mxu0 0.0
    %243 = vmatpush1.msra.mxu0 0.0
    %244 = vmatprep.subr.mxu0 0.0
    %245 = vmatpush1.msra.mxu0 0.0
    %246 = vmatprep.subr.mxu0 0.0
    %247 = vmatpush1.msra.mxu0 0.0
    %248 = vmatprep.subr.mxu0 0.0
    %249 = vmatpush1.msra.mxu0 0.0
    %250 = vmatprep.subr.mxu0 0.0
    %251 = vmatpush1.msra.mxu0 0.0
    %252 = vmatprep.subr.mxu0 0.0
    %253 = vmatpush1.msra.mxu0 0.0
    %254 = vmatprep.subr.mxu0 0.0
    %255 = vmatpush1.msra.mxu0 0.0
    %256 = vmatprep.subr.mxu0 0.0
    %257 = vmatpush1.msra.mxu0 0.0
    %258 = vmatprep.subr.mxu0 0.0
    %259 = vmatpush1.msra.mxu0 0.0
    %260 = vmatprep.subr.mxu0 0.0
    %261 = vmatpush1.msra.mxu0 0.0
    %262 = vmatprep.subr.mxu0 0.0
    %263 = vmatpush1.msra.mxu0 0.0
    %264 = vmatprep.subr.mxu0 0.0
    %265 = vmatpush1.msra.mxu0 0.0
    %266 = vmatprep.subr.mxu0 0.0
    %267 = vmatpush1.msra.mxu0 0.0
    %268 = vmatprep.subr.mxu0 0.0
    %269 = vmatpush1.msra.mxu0 0.0
    %270 = vmatprep.subr.mxu0 0.0
    %271 = vmatpush1.msra.mxu0 0.0
    %272 = vmatprep.subr.mxu0 0.0
    %273 = vmatpush1.msra.mxu0 0.0
    %274 = vmatprep.subr.mxu0 0.0
    %275 = vmatpush1.msra.mxu0 0.0
    %276 = vmatprep.mubr.f32.mxu0 0.0
    %277 = vmatmul.mubr.f32.gmra.mrb[0].mxu0 %v168
    %v278 = vpop.f32.mrb[0].mxu0
    %v279 = vadd.f32 %v94, %v278
    %v280 = vpop.f32.mrb[0].mxu0
    %281 = vmatprep.mubr.f32.mxu0 0.0
    %282 = vmatmul.mubr.f32.gmra.mrb[0].mxu0 %v171
    %v283 = vpop.f32.mrb[0].mxu0
    %v284 = vadd.f32 %v99, %v283
    %v285 = vpop.f32.mrb[0].mxu0
    %286 = vmatprep.mubr.f32.mxu0 0.0
    %287 = vmatmul.mubr.f32.gmra.mrb[0].mxu0 %v174
    %v288 = vpop.f32.mrb[0].mxu0
    %v289 = vadd.f32 %v104, %v288
    %v290 = vpop.f32.mrb[0].mxu0
    %291 = vmatprep.mubr.f32.mxu0 0.0
    %292 = vmatmul.mubr.f32.gmra.mrb[0].mxu0 %v177
    %v293 = vpop.f32.mrb[0].mxu0
    %v294 = vadd.f32 %v109, %v293
    %v295 = vpop.f32.mrb[0].mxu0
    %296 = vmatprep.mubr.f32.mxu0 0.0
    %297 = vmatmul.mubr.f32.gmra.mrb[0].mxu0 %v180
    %v298 = vpop.f32.mrb[0].mxu0
    %v299 = vadd.f32 %v114, %v298
    %v300 = vpop.f32.mrb[0].mxu0
    %301 = vmatprep.mubr.f32.mxu0 0.0
    %302 = vmatmul.mubr.f32.gmra.mrb[0].mxu0 %v183
    %v303 = vpop.f32.mrb[0].mxu0
    %v304 = vadd.f32 %v119, %v303
    %v305 = vpop.f32.mrb[0].mxu0
    %306 = vmatprep.mubr.f32.mxu0 0.0
    %307 = vmatmul.mubr.f32.gmra.mrb[0].mxu0 %v186
    %v308 = vpop.f32.mrb[0].mxu0
    %v309 = vadd.f32 %v124, %v308
    %v310 = vpop.f32.mrb[0].mxu0
    %311 = vmatprep.mubr.f32.mxu0 0.0
    %312 = vmatmul.mubr.f32.gmra.mrb[0].mxu0 %v189
    %v313 = vpop.f32.mrb[0].mxu0
    %v314 = vadd.f32 %v129, %v313
    %v315 = vpop.f32.mrb[0].mxu0
    %316 = vmatprep.mubr.f32.mxu0 0.0
    %317 = vmatmul.mubr.f32.gmra.mrb[0].mxu0 %v192
    %v318 = vpop.f32.mrb[0].mxu0
    %v319 = vadd.f32 %v134, %v318
    %v320 = vpop.f32.mrb[0].mxu0
    %321 = vmatprep.mubr.f32.mxu0 0.0
    %322 = vmatmul.mubr.f32.gmra.mrb[0].mxu0 %v195
    %v323 = vpop.f32.mrb[0].mxu0
    %v324 = vadd.f32 %v139, %v323
    %v325 = vpop.f32.mrb[0].mxu0
    %326 = vmatprep.mubr.f32.mxu0 0.0
    %327 = vmatmul.mubr.f32.gmra.mrb[0].mxu0 %v198
    %v328 = vpop.f32.mrb[0].mxu0
    %v329 = vadd.f32 %v144, %v328
    %v330 = vpop.f32.mrb[0].mxu0
    %331 = vmatprep.mubr.f32.mxu0 0.0
    %332 = vmatmul.mubr.f32.gmra.mrb[0].mxu0 %v201
    %v333 = vpop.f32.mrb[0].mxu0
    %v334 = vadd.f32 %v149, %v333
    %v335 = vpop.f32.mrb[0].mxu0
    %336 = vmatprep.mubr.f32.mxu0 0.0
    %337 = vmatmul.mubr.f32.gmra.mrb[0].mxu0 %v204
    %v338 = vpop.f32.mrb[0].mxu0
    %v339 = vadd.f32 %v154, %v338
    %v340 = vpop.f32.mrb[0].mxu0
    %341 = vmatprep.mubr.f32.mxu0 0.0
    %342 = vmatmul.mubr.f32.gmra.mrb[0].mxu0 %v207
    %v343 = vpop.f32.mrb[0].mxu0
    %v344 = vadd.f32 %v159, %v343
    %v345 = vpop.f32.mrb[0].mxu0
    %346 = vmatprep.mubr.f32.mxu0 0.0
    %347 = vmatmul.mubr.f32.gmra.mrb[0].mxu0 %v210
    %v348 = vpop.f32.mrb[0].mxu0
    %v349 = vadd.f32 %v164, %v348
    %v350 = vpop.f32.mrb[0].mxu0
    %351 = vdwg.mxu0
    %v352 = vtanh.pop %v279
    %v353 = vtanh.pop %v284
    %v354 = vtanh.pop %v289
    %v355 = vtanh.pop %v294
    %v356 = vtanh.pop %v299
    %v357 = vtanh.pop %v304
    %v358 = vtanh.pop %v309
    %v359 = vtanh.pop %v314
    %v360 = vtanh.pop %v319
    %v361 = vtanh.pop %v324
    %v362 = vtanh.pop %v329
    %v363 = vtanh.pop %v334
    %v364 = vtanh.pop %v339
    %v365 = vtanh.pop %v344
    %v366 = vtanh.pop %v349
    %v367 = vld [vmem:[%s4] sm:$0xff]
    %v368 = vld [vmem:[%s4 + $0x8] sm:$0xff]
    %v369 = vld [vmem:[%s4 + $0x10] sm:$0xff]
    %v370 = vld [vmem:[%s4 + $0x18] sm:$0xff]
    %v371 = vld [vmem:[%s4 + $0x20] sm:$0xff]
    %v372 = vld [vmem:[%s4 + $0x28] sm:$0xff]
    %v373 = vld [vmem:[%s4 + $0x30] sm:$0xff]
    %v374 = vld [vmem:[%s4 + $0x38] sm:$0xff]
    %v375 = vld [vmem:[%s4 + $0x40] sm:$0xff]
    %v376 = vld [vmem:[%s4 + $0x48] sm:$0xff]
    %v377 = vld [vmem:[%s4 + $0x50] sm:$0xff]
    %v378 = vld [vmem:[%s4 + $0x58] sm:$0xff]
    %v379 = vld [vmem:[%s4 + $0x60] sm:$0xf]
    %v380 = vld [vmem:[%s5] sm:$0xff]
    %v381 = vld [vmem:[%s5 + $0x8] sm:$0xff]
    %v382 = vld [vmem:[%s5 + $0x10] sm:$0xff]
    %v383 = vld [vmem:[%s5 + $0x18] sm:$0xff]
    %v384 = vld [vmem:[%s5 + $0x20] sm:$0xff]
    %v385 = vld [vmem:[%s5 + $0x28] sm:$0xff]
    %v386 = vld [vmem:[%s5 + $0x30] sm:$0xff]
    %v387 = vld [vmem:[%s5 + $0x38] sm:$0xff]
    %v388 = vld [vmem:[%s5 + $0x40] sm:$0xff]
    %v389 = vld [vmem:[%s5 + $0x48] sm:$0xff]
    %v390 = vld [vmem:[%s5 + $0x50] sm:$0xff]
    %v391 = vld [vmem:[%s5 + $0x58] sm:$0xff]
    %v392 = vld [vmem:[%s5 + $0x60] sm:$0xf]
    %394 = vset.pattern.permute.xlu0 0
    %395 = vperm.xlu0 %394, %v380
    %v396 = vpop.permute.xlu0 %395
    %399 = vset.pattern.permute.xlu0 0
    %400 = vperm.xlu0 %399, %v381
    %v401 = vpop.permute.xlu0 %400
    %404 = vset.pattern.permute.xlu0 0
    %405 = vperm.xlu0 %404, %v382
    %v406 = vpop.permute.xlu0 %405
    %409 = vset.pattern.permute.xlu0 0
    %410 = vperm.xlu0 %409, %v383
    %v411 = vpop.permute.xlu0 %410
    %414 = vset.pattern.permute.xlu0 0
    %415 = vperm.xlu0 %414, %v384
    %v416 = vpop.permute.xlu0 %415
    %419 = vset.pattern.permute.xlu0 0
    %420 = vperm.xlu0 %419, %v385
    %v421 = vpop.permute.xlu0 %420
    %424 = vset.pattern.permute.xlu0 0
    %425 = vperm.xlu0 %424, %v386
    %v426 = vpop.permute.xlu0 %425
    %429 = vset.pattern.permute.xlu0 0
    %430 = vperm.xlu0 %429, %v387
    %v431 = vpop.permute.xlu0 %430
    %434 = vset.pattern.permute.xlu0 0
    %435 = vperm.xlu0 %434, %v388
    %v436 = vpop.permute.xlu0 %435
    %439 = vset.pattern.permute.xlu0 0
    %440 = vperm.xlu0 %439, %v389
    %v441 = vpop.permute.xlu0 %440
    %444 = vset.pattern.permute.xlu0 0
    %445 = vperm.xlu0 %444, %v390
    %v446 = vpop.permute.xlu0 %445
    %449 = vset.pattern.permute.xlu0 0
    %450 = vperm.xlu0 %449, %v391
    %v451 = vpop.permute.xlu0 %450
    %454 = vset.pattern.permute.xlu0 0
    %455 = vperm.xlu0 %454, %v392
    %v456 = vpop.permute.xlu0 %455
    %vm458 = vcmask 982016
    %v460 = vsel %vm458, %v367, 0
    %v463 = vsel %vm458, %v368, 0
    %v466 = vsel %vm458, %v369, 0
    %v469 = vsel %vm458, %v370, 0
    %v472 = vsel %vm458, %v371, 0
    %v475 = vsel %vm458, %v372, 0
    %v478 = vsel %vm458, %v373, 0
    %v481 = vsel %vm458, %v374, 0
    %v484 = vsel %vm458, %v375, 0
    %v487 = vsel %vm458, %v376, 0
    %v490 = vsel %vm458, %v377, 0
    %v493 = vsel %vm458, %v378, 0
    %v496 = vsel %vm458, %v379, 0
    %498 = vmatprep.subr.mxu0 0.0
    %499 = vmatpush1.msra.mxu0 %v352
    %500 = vmatprep.subr.mxu0 0.0
    %501 = vmatpush1.msra.mxu0 %v353
    %502 = vmatprep.subr.mxu0 0.0
    %503 = vmatpush1.msra.mxu0 %v354
    %504 = vmatprep.subr.mxu0 0.0
    %505 = vmatpush1.msra.mxu0 %v355
    %506 = vmatprep.subr.mxu0 0.0
    %507 = vmatpush1.msra.mxu0 %v356
    %508 = vmatprep.subr.mxu0 0.0
    %509 = vmatpush1.msra.mxu0 %v357
    %510 = vmatprep.subr.mxu0 0.0
    %511 = vmatpush1.msra.mxu0 %v358
    %512 = vmatprep.subr.mxu0 0.0
    %513 = vmatpush1.msra.mxu0 %v359
    %514 = vmatprep.subr.mxu0 0.0
    %515 = vmatpush1.msra.mxu0 %v360
    %516 = vmatprep.subr.mxu0 0.0
    %517 = vmatpush1.msra.mxu0 %v361
    %518 = vmatprep.subr.mxu0 0.0
    %519 = vmatpush1.msra.mxu0 %v362
    %520 = vmatprep.subr.mxu0 0.0
    %521 = vmatpush1.msra.mxu0 %v363
    %522 = vmatprep.subr.mxu0 0.0
    %523 = vmatpush1.msra.mxu0 %v364
    %524 = vmatprep.subr.mxu0 0.0
    %525 = vmatpush1.msra.mxu0 %v365
    %526 = vmatprep.subr.mxu0 0.0
    %527 = vmatpush1.msra.mxu0 %v366
    %528 = vmatprep.subr.mxu0 0.0
    %529 = vmatpush1.msra.mxu0 0.0
    %530 = vmatprep.subr.mxu0 0.0
    %531 = vmatpush1.msra.mxu0 0.0
    %532 = vmatprep.subr.mxu0 0.0
    %533 = vmatpush1.msra.mxu0 0.0
    %534 = vmatprep.subr.mxu0 0.0
    %535 = vmatpush1.msra.mxu0 0.0
    %536 = vmatprep.subr.mxu0 0.0
    %537 = vmatpush1.msra.mxu0 0.0
    %538 = vmatprep.subr.mxu0 0.0
    %539 = vmatpush1.msra.mxu0 0.0
    %540 = vmatprep.subr.mxu0 0.0
    %541 = vmatpush1.msra.mxu0 0.0
    %542 = vmatprep.subr.mxu0 0.0
    %543 = vmatpush1.msra.mxu0 0.0
    %544 = vmatprep.subr.mxu0 0.0
    %545 = vmatpush1.msra.mxu0 0.0
    %546 = vmatprep.subr.mxu0 0.0
    %547 = vmatpush1.msra.mxu0 0.0
    %548 = vmatprep.subr.mxu0 0.0
    %549 = vmatpush1.msra.mxu0 0.0
    %550 = vmatprep.subr.mxu0 0.0
    %551 = vmatpush1.msra.mxu0 0.0
    %552 = vmatprep.subr.mxu0 0.0
    %553 = vmatpush1.msra.mxu0 0.0
    %554 = vmatprep.subr.mxu0 0.0
    %555 = vmatpush1.msra.mxu0 0.0
    %556 = vmatprep.subr.mxu0 0.0
    %557 = vmatpush1.msra.mxu0 0.0
    %558 = vmatprep.subr.mxu0 0.0
    %559 = vmatpush1.msra.mxu0 0.0
    %560 = vmatprep.subr.mxu0 0.0
    %561 = vmatpush1.msra.mxu0 0.0
    %562 = vmatprep.mubr.f32.mxu0 0.0
    %563 = vmatmul.mubr.f32.gmra.mrb[0].mxu0 %v460
    %v564 = vpop.f32.mrb[0].mxu0
    %v565 = vadd.f32 %v396, %v564
    %v566 = vpop.f32.mrb[0].mxu0
    %567 = vmatprep.mubr.f32.mxu0 0.0
    %568 = vmatmul.mubr.f32.gmra.mrb[0].mxu0 %v463
    %v569 = vpop.f32.mrb[0].mxu0
    %v570 = vadd.f32 %v401, %v569
    %v571 = vpop.f32.mrb[0].mxu0
    %572 = vmatprep.mubr.f32.mxu0 0.0
    %573 = vmatmul.mubr.f32.gmra.mrb[0].mxu0 %v466
    %v574 = vpop.f32.mrb[0].mxu0
    %v575 = vadd.f32 %v406, %v574
    %v576 = vpop.f32.mrb[0].mxu0
    %577 = vmatprep.mubr.f32.mxu0 0.0
    %578 = vmatmul.mubr.f32.gmra.mrb[0].mxu0 %v469
    %v579 = vpop.f32.mrb[0].mxu0
    %v580 = vadd.f32 %v411, %v579
    %v581 = vpop.f32.mrb[0].mxu0
    %582 = vmatprep.mubr.f32.mxu0 0.0
    %583 = vmatmul.mubr.f32.gmra.mrb[0].mxu0 %v472
    %v584 = vpop.f32.mrb[0].mxu0
    %v585 = vadd.f32 %v416, %v584
    %v586 = vpop.f32.mrb[0].mxu0
    %587 = vmatprep.mubr.f32.mxu0 0.0
    %588 = vmatmul.mubr.f32.gmra.mrb[0].mxu0 %v475
    %v589 = vpop.f32.mrb[0].mxu0
    %v590 = vadd.f32 %v421, %v589
    %v591 = vpop.f32.mrb[0].mxu0
    %592 = vmatprep.mubr.f32.mxu0 0.0
    %593 = vmatmul.mubr.f32.gmra.mrb[0].mxu0 %v478
    %v594 = vpop.f32.mrb[0].mxu0
    %v595 = vadd.f32 %v426, %v594
    %v596 = vpop.f32.mrb[0].mxu0
    %597 = vmatprep.mubr.f32.mxu0 0.0
    %598 = vmatmul.mubr.f32.gmra.mrb[0].mxu0 %v481
    %v599 = vpop.f32.mrb[0].mxu0
    %v600 = vadd.f32 %v431, %v599
    %v601 = vpop.f32.mrb[0].mxu0
    %602 = vmatprep.mubr.f32.mxu0 0.0
    %603 = vmatmul.mubr.f32.gmra.mrb[0].mxu0 %v484
    %v604 = vpop.f32.mrb[0].mxu0
    %v605 = vadd.f32 %v436, %v604
    %v606 = vpop.f32.mrb[0].mxu0
    %607 = vmatprep.mubr.f32.mxu0 0.0
    %608 = vmatmul.mubr.f32.gmra.mrb[0].mxu0 %v487
    %v609 = vpop.f32.mrb[0].mxu0
    %v610 = vadd.f32 %v441, %v609
    %v611 = vpop.f32.mrb[0].mxu0
    %612 = vmatprep.mubr.f32.mxu0 0.0
    %613 = vmatmul.mubr.f32.gmra.mrb[0].mxu0 %v490
    %v614 = vpop.f32.mrb[0].mxu0
    %v615 = vadd.f32 %v446, %v614
    %v616 = vpop.f32.mrb[0].mxu0
    %617 = vmatprep.mubr.f32.mxu0 0.0
    %618 = vmatmul.mubr.f32.gmra.mrb[0].mxu0 %v493
    %v619 = vpop.f32.mrb[0].mxu0
    %v620 = vadd.f32 %v451, %v619
    %v621 = vpop.f32.mrb[0].mxu0
    %622 = vmatprep.mubr.f32.mxu0 0.0
    %623 = vmatmul.mubr.f32.gmra.mrb[0].mxu0 %v496
    %v624 = vpop.f32.mrb[0].mxu0
    %v625 = vadd.f32 %v456, %v624
    %v626 = vpop.f32.mrb[0].mxu0
    %627 = vdwg.mxu0
    %v628 = vtanh.pop %v565
    %v629 = vtanh.pop %v570
    %v630 = vtanh.pop %v575
    %v631 = vtanh.pop %v580
    %v632 = vtanh.pop %v585
    %v633 = vtanh.pop %v590
    %v634 = vtanh.pop %v595
    %v635 = vtanh.pop %v600
    %v636 = vtanh.pop %v605
    %v637 = vtanh.pop %v610
    %v638 = vtanh.pop %v615
    %v639 = vtanh.pop %v620
    %v640 = vtanh.pop %v625
    %v641 = vld [vmem:[%s6] sm:$0xff]
    %v642 = vld [vmem:[%s6 + $0x8] sm:$0xff]
    %v643 = vld [vmem:[%s6 + $0x10] sm:$0xff]
    %v644 = vld [vmem:[%s6 + $0x18] sm:$0xff]
    %v645 = vld [vmem:[%s6 + $0x20] sm:$0xff]
    %v646 = vld [vmem:[%s6 + $0x28] sm:$0xff]
    %v647 = vld [vmem:[%s6 + $0x30] sm:$0xff]
    %v648 = vld [vmem:[%s6 + $0x38] sm:$0xff]
    %v649 = vld [vmem:[%s6 + $0x40] sm:$0xff]
    %v650 = vld [vmem:[%s6 + $0x48] sm:$0xff]
    %v651 = vld [vmem:[%s7] sm:$0xff]
    %v652 = vld [vmem:[%s7 + $0x8] sm:$0xff]
    %v653 = vld [vmem:[%s7 + $0x10] sm:$0xff]
    %v654 = vld [vmem:[%s7 + $0x18] sm:$0xff]
    %v655 = vld [vmem:[%s7 + $0x20] sm:$0xff]
    %v656 = vld [vmem:[%s7 + $0x28] sm:$0xff]
    %v657 = vld [vmem:[%s7 + $0x30] sm:$0xff]
    %v658 = vld [vmem:[%s7 + $0x38] sm:$0xff]
    %v659 = vld [vmem:[%s7 + $0x40] sm:$0xff]
    %v660 = vld [vmem:[%s7 + $0x48] sm:$0xff]
    %662 = vset.pattern.permute.xlu0 0
    %663 = vperm.xlu0 %662, %v651
    %v664 = vpop.permute.xlu0 %663
    %667 = vset.pattern.permute.xlu0 0
    %668 = vperm.xlu0 %667, %v652
    %v669 = vpop.permute.xlu0 %668
    %672 = vset.pattern.permute.xlu0 0
    %673 = vperm.xlu0 %672, %v653
    %v674 = vpop.permute.xlu0 %673
    %677 = vset.pattern.permute.xlu0 0
    %678 = vperm.xlu0 %677, %v654
    %v679 = vpop.permute.xlu0 %678
    %682 = vset.pattern.permute.xlu0 0
    %683 = vperm.xlu0 %682, %v655
    %v684 = vpop.permute.xlu0 %683
    %687 = vset.pattern.permute.xlu0 0
    %688 = vperm.xlu0 %687, %v656
    %v689 = vpop.permute.xlu0 %688
    %692 = vset.pattern.permute.xlu0 0
    %693 = vperm.xlu0 %692, %v657
    %v694 = vpop.permute.xlu0 %693
    %697 = vset.pattern.permute.xlu0 0
    %698 = vperm.xlu0 %697, %v658
    %v699 = vpop.permute.xlu0 %698
    %702 = vset.pattern.permute.xlu0 0
    %703 = vperm.xlu0 %702, %v659
    %v704 = vpop.permute.xlu0 %703
    %707 = vset.pattern.permute.xlu0 0
    %708 = vperm.xlu0 %707, %v660
    %v709 = vpop.permute.xlu0 %708
    %vm711 = vcmask 818176
    %v713 = vsel %vm711, %v641, 0
    %v716 = vsel %vm711, %v642, 0
    %v719 = vsel %vm711, %v643, 0
    %v722 = vsel %vm711, %v644, 0
    %v725 = vsel %vm711, %v645, 0
    %v728 = vsel %vm711, %v646, 0
    %v731 = vsel %vm711, %v647, 0
    %v734 = vsel %vm711, %v648, 0
    %v737 = vsel %vm711, %v649, 0
    %v740 = vsel %vm711, %v650, 0
    %vm742 = vcmask 1043456
    %v744 = vsel %vm742, %v640, 0
    %746 = vmatprep.subr.mxu0 0.0
    %747 = vmatpush1.msra.mxu0 %v628
    %748 = vmatprep.subr.mxu0 0.0
    %749 = vmatpush1.msra.mxu0 %v629
    %750 = vmatprep.subr.mxu0 0.0
    %751 = vmatpush1.msra.mxu0 %v630
    %752 = vmatprep.subr.mxu0 0.0
    %753 = vmatpush1.msra.mxu0 %v631
    %754 = vmatprep.subr.mxu0 0.0
    %755 = vmatpush1.msra.mxu0 %v632
    %756 = vmatprep.subr.mxu0 0.0
    %757 = vmatpush1.msra.mxu0 %v633
    %758 = vmatprep.subr.mxu0 0.0
    %759 = vmatpush1.msra.mxu0 %v634
    %760 = vmatprep.subr.mxu0 0.0
    %761 = vmatpush1.msra.mxu0 %v635
    %762 = vmatprep.subr.mxu0 0.0
    %763 = vmatpush1.msra.mxu0 %v636
    %764 = vmatprep.subr.mxu0 0.0
    %765 = vmatpush1.msra.mxu0 %v637
    %766 = vmatprep.subr.mxu0 0.0
    %767 = vmatpush1.msra.mxu0 %v638
    %768 = vmatprep.subr.mxu0 0.0
    %769 = vmatpush1.msra.mxu0 %v639
    %770 = vmatprep.subr.mxu0 0.0
    %771 = vmatpush1.msra.mxu0 %v744
    %772 = vmatprep.subr.mxu0 0.0
    %773 = vmatpush1.msra.mxu0 0.0
    %774 = vmatprep.subr.mxu0 0.0
    %775 = vmatpush1.msra.mxu0 0.0
    %776 = vmatprep.subr.mxu0 0.0
    %777 = vmatpush1.msra.mxu0 0.0
    %778 = vmatprep.subr.mxu0 0.0
    %779 = vmatpush1.msra.mxu0 0.0
    %780 = vmatprep.subr.mxu0 0.0
    %781 = vmatpush1.msra.mxu0 0.0
    %782 = vmatprep.subr.mxu0 0.0
    %783 = vmatpush1.msra.mxu0 0.0
    %784 = vmatprep.subr.mxu0 0.0
    %785 = vmatpush1.msra.mxu0 0.0
    %786 = vmatprep.subr.mxu0 0.0
    %787 = vmatpush1.msra.mxu0 0.0
    %788 = vmatprep.subr.mxu0 0.0
    %789 = vmatpush1.msra.mxu0 0.0
    %790 = vmatprep.subr.mxu0 0.0
    %791 = vmatpush1.msra.mxu0 0.0
    %792 = vmatprep.subr.mxu0 0.0
    %793 = vmatpush1.msra.mxu0 0.0
    %794 = vmatprep.subr.mxu0 0.0
    %795 = vmatpush1.msra.mxu0 0.0
    %796 = vmatprep.subr.mxu0 0.0
    %797 = vmatpush1.msra.mxu0 0.0
    %798 = vmatprep.subr.mxu0 0.0
    %799 = vmatpush1.msra.mxu0 0.0
    %800 = vmatprep.subr.mxu0 0.0
    %801 = vmatpush1.msra.mxu0 0.0
    %802 = vmatprep.subr.mxu0 0.0
    %803 = vmatpush1.msra.mxu0 0.0
    %804 = vmatprep.subr.mxu0 0.0
    %805 = vmatpush1.msra.mxu0 0.0
    %806 = vmatprep.subr.mxu0 0.0
    %807 = vmatpush1.msra.mxu0 0.0
    %808 = vmatprep.subr.mxu0 0.0
    %809 = vmatpush1.msra.mxu0 0.0
    %810 = vmatprep.mubr.f32.mxu0 0.0
    %811 = vmatmul.mubr.f32.gmra.mrb[0].mxu0 %v713
    %v812 = vpop.f32.mrb[0].mxu0
    %v813 = vadd.f32 %v664, %v812
    %v814 = vpop.f32.mrb[0].mxu0
    %815 = vmatprep.mubr.f32.mxu0 0.0
    %816 = vmatmul.mubr.f32.gmra.mrb[0].mxu0 %v716
    %v817 = vpop.f32.mrb[0].mxu0
    %v818 = vadd.f32 %v669, %v817
    %v819 = vpop.f32.mrb[0].mxu0
    %820 = vmatprep.mubr.f32.mxu0 0.0
    %821 = vmatmul.mubr.f32.gmra.mrb[0].mxu0 %v719
    %v822 = vpop.f32.mrb[0].mxu0
    %v823 = vadd.f32 %v674, %v822
    %v824 = vpop.f32.mrb[0].mxu0
    %825 = vmatprep.mubr.f32.mxu0 0.0
    %826 = vmatmul.mubr.f32.gmra.mrb[0].mxu0 %v722
    %v827 = vpop.f32.mrb[0].mxu0
    %v828 = vadd.f32 %v679, %v827
    %v829 = vpop.f32.mrb[0].mxu0
    %830 = vmatprep.mubr.f32.mxu0 0.0
    %831 = vmatmul.mubr.f32.gmra.mrb[0].mxu0 %v725
    %v832 = vpop.f32.mrb[0].mxu0
    %v833 = vadd.f32 %v684, %v832
    %v834 = vpop.f32.mrb[0].mxu0
    %835 = vmatprep.mubr.f32.mxu0 0.0
    %836 = vmatmul.mubr.f32.gmra.mrb[0].mxu0 %v728
    %v837 = vpop.f32.mrb[0].mxu0
    %v838 = vadd.f32 %v689, %v837
    %v839 = vpop.f32.mrb[0].mxu0
    %840 = vmatprep.mubr.f32.mxu0 0.0
    %841 = vmatmul.mubr.f32.gmra.mrb[0].mxu0 %v731
    %v842 = vpop.f32.mrb[0].mxu0
    %v843 = vadd.f32 %v694, %v842
    %v844 = vpop.f32.mrb[0].mxu0
    %845 = vmatprep.mubr.f32.mxu0 0.0
    %846 = vmatmul.mubr.f32.gmra.mrb[0].mxu0 %v734
    %v847 = vpop.f32.mrb[0].mxu0
    %v848 = vadd.f32 %v699, %v847
    %v849 = vpop.f32.mrb[0].mxu0
    %850 = vmatprep.mubr.f32.mxu0 0.0
    %851 = vmatmul.mubr.f32.gmra.mrb[0].mxu0 %v737
    %v852 = vpop.f32.mrb[0].mxu0
    %v853 = vadd.f32 %v704, %v852
    %v854 = vpop.f32.mrb[0].mxu0
    %855 = vmatprep.mubr.f32.mxu0 0.0
    %856 = vmatmul.mubr.f32.gmra.mrb[0].mxu0 %v740
    %v857 = vpop.f32.mrb[0].mxu0
    %v858 = vadd.f32 %v709, %v857
    %v859 = vpop.f32.mrb[0].mxu0
    %860 = vdwg.mxu0
    %v861 = vtanh.pop %v813
    %v862 = vtanh.pop %v818
    %v863 = vtanh.pop %v823
    %v864 = vtanh.pop %v828
    %v865 = vtanh.pop %v833
    %v866 = vtanh.pop %v838
    %v867 = vtanh.pop %v843
    %v868 = vtanh.pop %v848
    %v869 = vtanh.pop %v853
    %v870 = vtanh.pop %v858
    %v871 = vld [vmem:[%s8] sm:$0xff]
    %v872 = vld [vmem:[%s8 + $0x8] sm:$0xff]
    %v873 = vld [vmem:[%s8 + $0x10] sm:$0xff]
    %v874 = vld [vmem:[%s8 + $0x18] sm:$0xff]
    %v875 = vld [vmem:[%s8 + $0x20] sm:$0xff]
    %v876 = vld [vmem:[%s8 + $0x28] sm:$0xff]
    %v877 = vld [vmem:[%s8 + $0x30] sm:$0xff]
    %v878 = vld [vmem:[%s8 + $0x38] sm:$0xf]
    %v879 = vld [vmem:[%s9] sm:$0xff]
    %v880 = vld [vmem:[%s9 + $0x8] sm:$0xff]
    %v881 = vld [vmem:[%s9 + $0x10] sm:$0xff]
    %v882 = vld [vmem:[%s9 + $0x18] sm:$0xff]
    %v883 = vld [vmem:[%s9 + $0x20] sm:$0xff]
    %v884 = vld [vmem:[%s9 + $0x28] sm:$0xff]
    %v885 = vld [vmem:[%s9 + $0x30] sm:$0xff]
    %v886 = vld [vmem:[%s9 + $0x38] sm:$0xf]
    %888 = vset.pattern.permute.xlu0 0
    %889 = vperm.xlu0 %888, %v879
    %v890 = vpop.permute.xlu0 %889
    %893 = vset.pattern.permute.xlu0 0
    %894 = vperm.xlu0 %893, %v880
    %v895 = vpop.permute.xlu0 %894
    %898 = vset.pattern.permute.xlu0 0
    %899 = vperm.xlu0 %898, %v881
    %v900 = vpop.permute.xlu0 %899
    %903 = vset.pattern.permute.xlu0 0
    %904 = vperm.xlu0 %903, %v882
    %v905 = vpop.permute.xlu0 %904
    %908 = vset.pattern.permute.xlu0 0
    %909 = vperm.xlu0 %908, %v883
    %v910 = vpop.permute.xlu0 %909
    %913 = vset.pattern.permute.xlu0 0
    %914 = vperm.xlu0 %913, %v884
    %v915 = vpop.permute.xlu0 %914
    %918 = vset.pattern.permute.xlu0 0
    %919 = vperm.xlu0 %918, %v885
    %v920 = vpop.permute.xlu0 %919
    %923 = vset.pattern.permute.xlu0 0
    %924 = vperm.xlu0 %923, %v886
    %v925 = vpop.permute.xlu0 %924
    %vm927 = vcmask 654336
    %v929 = vsel %vm927, %v871, 0
    %v932 = vsel %vm927, %v872, 0
    %v935 = vsel %vm927, %v873, 0
    %v938 = vsel %vm927, %v874, 0
    %v941 = vsel %vm927, %v875, 0
    %v944 = vsel %vm927, %v876, 0
    %v947 = vsel %vm927, %v877, 0
    %v950 = vsel %vm927, %v878, 0
    %952 = vmatprep.subr.mxu0 0.0
    %953 = vmatpush1.msra.mxu0 %v861
    %954 = vmatprep.subr.mxu0 0.0
    %955 = vmatpush1.msra.mxu0 %v862
    %956 = vmatprep.subr.mxu0 0.0
    %957 = vmatpush1.msra.mxu0 %v863
    %958 = vmatprep.subr.mxu0 0.0
    %959 = vmatpush1.msra.mxu0 %v864
    %960 = vmatprep.subr.mxu0 0.0
    %961 = vmatpush1.msra.mxu0 %v865
    %962 = vmatprep.subr.mxu0 0.0
    %963 = vmatpush1.msra.mxu0 %v866
    %964 = vmatprep.subr.mxu0 0.0
    %965 = vmatpush1.msra.mxu0 %v867
    %966 = vmatprep.subr.mxu0 0.0
    %967 = vmatpush1.msra.mxu0 %v868
    %968 = vmatprep.subr.mxu0 0.0
    %969 = vmatpush1.msra.mxu0 %v869
    %970 = vmatprep.subr.mxu0 0.0
    %971 = vmatpush1.msra.mxu0 %v870
    %972 = vmatprep.subr.mxu0 0.0
    %973 = vmatpush1.msra.mxu0 0.0
    %974 = vmatprep.subr.mxu0 0.0
    %975 = vmatpush1.msra.mxu0 0.0
    %976 = vmatprep.subr.mxu0 0.0
    %977 = vmatpush1.msra.mxu0 0.0
    %978 = vmatprep.subr.mxu0 0.0
    %979 = vmatpush1.msra.mxu0 0.0
    %980 = vmatprep.subr.mxu0 0.0
    %981 = vmatpush1.msra.mxu0 0.0
    %982 = vmatprep.subr.mxu0 0.0
    %983 = vmatpush1.msra.mxu0 0.0
    %984 = vmatprep.subr.mxu0 0.0
    %985 = vmatpush1.msra.mxu0 0.0
    %986 = vmatprep.subr.mxu0 0.0
    %987 = vmatpush1.msra.mxu0 0.0
    %988 = vmatprep.subr.mxu0 0.0
    %989 = vmatpush1.msra.mxu0 0.0
    %990 = vmatprep.subr.mxu0 0.0
    %991 = vmatpush1.msra.mxu0 0.0
    %992 = vmatprep.subr.mxu0 0.0
    %993 = vmatpush1.msra.mxu0 0.0
    %994 = vmatprep.subr.mxu0 0.0
    %995 = vmatpush1.msra.mxu0 0.0
    %996 = vmatprep.subr.mxu0 0.0
    %997 = vmatpush1.msra.mxu0 0.0
    %998 = vmatprep.subr.mxu0 0.0
    %999 = vmatpush1.msra.mxu0 0.0
    %1000 = vmatprep.subr.mxu0 0.0
    %1001 = vmatpush1.msra.mxu0 0.0
    %1002 = vmatprep.subr.mxu0 0.0
    %1003 = vmatpush1.msra.mxu0 0.0
    %1004 = vmatprep.subr.mxu0 0.0
    %1005 = vmatpush1.msra.mxu0 0.0
    %1006 = vmatprep.subr.mxu0 0.0
    %1007 = vmatpush1.msra.mxu0 0.0
    %1008 = vmatprep.subr.mxu0 0.0
    %1009 = vmatpush1.msra.mxu0 0.0
    %1010 = vmatprep.subr.mxu0 0.0
    %1011 = vmatpush1.msra.mxu0 0.0
    %1012 = vmatprep.subr.mxu0 0.0
    %1013 = vmatpush1.msra.mxu0 0.0
    %1014 = vmatprep.subr.mxu0 0.0
    %1015 = vmatpush1.msra.mxu0 0.0
    %1016 = vmatprep.mubr.f32.mxu0 0.0
    %1017 = vmatmul.mubr.f32.gmra.mrb[0].mxu0 %v929
    %v1018 = vpop.f32.mrb[0].mxu0
    %v1019 = vadd.f32 %v890, %v1018
    %v1020 = vpop.f32.mrb[0].mxu0
    %1021 = vmatprep.mubr.f32.mxu0 0.0
    %1022 = vmatmul.mubr.f32.gmra.mrb[0].mxu0 %v932
    %v1023 = vpop.f32.mrb[0].mxu0
    %v1024 = vadd.f32 %v895, %v1023
    %v1025 = vpop.f32.mrb[0].mxu0
    %1026 = vmatprep.mubr.f32.mxu0 0.0
    %1027 = vmatmul.mubr.f32.gmra.mrb[0].mxu0 %v935
    %v1028 = vpop.f32.mrb[0].mxu0
    %v1029 = vadd.f32 %v900, %v1028
    %v1030 = vpop.f32.mrb[0].mxu0
    %1031 = vmatprep.mubr.f32.mxu0 0.0
    %1032 = vmatmul.mubr.f32.gmra.mrb[0].mxu0 %v938
    %v1033 = vpop.f32.mrb[0].mxu0
    %v1034 = vadd.f32 %v905, %v1033
    %v1035 = vpop.f32.mrb[0].mxu0
    %1036 = vmatprep.mubr.f32.mxu0 0.0
    %1037 = vmatmul.mubr.f32.gmra.mrb[0].mxu0 %v941
    %v1038 = vpop.f32.mrb[0].mxu0
    %v1039 = vadd.f32 %v910, %v1038
    %v1040 = vpop.f32.mrb[0].mxu0
    %1041 = vmatprep.mubr.f32.mxu0 0.0
    %1042 = vmatmul.mubr.f32.gmra.mrb[0].mxu0 %v944
    %v1043 = vpop.f32.mrb[0].mxu0
    %v1044 = vadd.f32 %v915, %v1043
    %v1045 = vpop.f32.mrb[0].mxu0
    %1046 = vmatprep.mubr.f32.mxu0 0.0
    %1047 = vmatmul.mubr.f32.gmra.mrb[0].mxu0 %v947
    %v1048 = vpop.f32.mrb[0].mxu0
    %v1049 = vadd.f32 %v920, %v1048
    %v1050 = vpop.f32.mrb[0].mxu0
    %1051 = vmatprep.mubr.f32.mxu0 0.0
    %1052 = vmatmul.mubr.f32.gmra.mrb[0].mxu0 %v950
    %v1053 = vpop.f32.mrb[0].mxu0
    %v1054 = vadd.f32 %v925, %v1053
    %v1055 = vpop.f32.mrb[0].mxu0
    %1056 = vdwg.mxu0
    %v1057 = vtanh.pop %v1019
    %v1058 = vtanh.pop %v1024
    %v1059 = vtanh.pop %v1029
    %v1060 = vtanh.pop %v1034
    %v1061 = vtanh.pop %v1039
    %v1062 = vtanh.pop %v1044
    %v1063 = vtanh.pop %v1049
    %v1064 = vtanh.pop %v1054
    %v1065 = vld [vmem:[%s10] sm:$0xff]
    %v1066 = vld [vmem:[%s10 + $0x8] sm:$0xff]
    %v1067 = vld [vmem:[%s10 + $0x10] sm:$0xff]
    %v1068 = vld [vmem:[%s10 + $0x18] sm:$0xff]
    %v1069 = vld [vmem:[%s10 + $0x20] sm:$0xff]
    %v1070 = vld [vmem:[%s11] sm:$0xff]
    %v1071 = vld [vmem:[%s11 + $0x8] sm:$0xff]
    %v1072 = vld [vmem:[%s11 + $0x10] sm:$0xff]
    %v1073 = vld [vmem:[%s11 + $0x18] sm:$0xff]
    %v1074 = vld [vmem:[%s11 + $0x20] sm:$0xff]
    %1076 = vset.pattern.permute.xlu0 0
    %1077 = vperm.xlu0 %1076, %v1070
    %v1078 = vpop.permute.xlu0 %1077
    %1081 = vset.pattern.permute.xlu0 0
    %1082 = vperm.xlu0 %1081, %v1071
    %v1083 = vpop.permute.xlu0 %1082
    %1086 = vset.pattern.permute.xlu0 0
    %1087 = vperm.xlu0 %1086, %v1072
    %v1088 = vpop.permute.xlu0 %1087
    %1091 = vset.pattern.permute.xlu0 0
    %1092 = vperm.xlu0 %1091, %v1073
    %v1093 = vpop.permute.xlu0 %1092
    %1096 = vset.pattern.permute.xlu0 0
    %1097 = vperm.xlu0 %1096, %v1074
    %v1098 = vpop.permute.xlu0 %1097
    %vm1100 = vcmask 490496
    %v1102 = vsel %vm1100, %v1065, 0
    %v1105 = vsel %vm1100, %v1066, 0
    %v1108 = vsel %vm1100, %v1067, 0
    %v1111 = vsel %vm1100, %v1068, 0
    %v1114 = vsel %vm1100, %v1069, 0
    %v1117 = vsel %vm742, %v1064, 0
    %1119 = vmatprep.subr.mxu0 0.0
    %1120 = vmatpush1.msra.mxu0 %v1057
    %1121 = vmatprep.subr.mxu0 0.0
    %1122 = vmatpush1.msra.mxu0 %v1058
    %1123 = vmatprep.subr.mxu0 0.0
    %1124 = vmatpush1.msra.mxu0 %v1059
    %1125 = vmatprep.subr.mxu0 0.0
    %1126 = vmatpush1.msra.mxu0 %v1060
    %1127 = vmatprep.subr.mxu0 0.0
    %1128 = vmatpush1.msra.mxu0 %v1061
    %1129 = vmatprep.subr.mxu0 0.0
    %1130 = vmatpush1.msra.mxu0 %v1062
    %1131 = vmatprep.subr.mxu0 0.0
    %1132 = vmatpush1.msra.mxu0 %v1063
    %1133 = vmatprep.subr.mxu0 0.0
    %1134 = vmatpush1.msra.mxu0 %v1117
    %1135 = vmatprep.subr.mxu0 0.0
    %1136 = vmatpush1.msra.mxu0 0.0
    %1137 = vmatprep.subr.mxu0 0.0
    %1138 = vmatpush1.msra.mxu0 0.0
    %1139 = vmatprep.subr.mxu0 0.0
    %1140 = vmatpush1.msra.mxu0 0.0
    %1141 = vmatprep.subr.mxu0 0.0
    %1142 = vmatpush1.msra.mxu0 0.0
    %1143 = vmatprep.subr.mxu0 0.0
    %1144 = vmatpush1.msra.mxu0 0.0
    %1145 = vmatprep.subr.mxu0 0.0
    %1146 = vmatpush1.msra.mxu0 0.0
    %1147 = vmatprep.subr.mxu0 0.0
    %1148 = vmatpush1.msra.mxu0 0.0
    %1149 = vmatprep.subr.mxu0 0.0
    %1150 = vmatpush1.msra.mxu0 0.0
    %1151 = vmatprep.subr.mxu0 0.0
    %1152 = vmatpush1.msra.mxu0 0.0
    %1153 = vmatprep.subr.mxu0 0.0
    %1154 = vmatpush1.msra.mxu0 0.0
    %1155 = vmatprep.subr.mxu0 0.0
    %1156 = vmatpush1.msra.mxu0 0.0
    %1157 = vmatprep.subr.mxu0 0.0
    %1158 = vmatpush1.msra.mxu0 0.0
    %1159 = vmatprep.subr.mxu0 0.0
    %1160 = vmatpush1.msra.mxu0 0.0
    %1161 = vmatprep.subr.mxu0 0.0
    %1162 = vmatpush1.msra.mxu0 0.0
    %1163 = vmatprep.subr.mxu0 0.0
    %1164 = vmatpush1.msra.mxu0 0.0
    %1165 = vmatprep.subr.mxu0 0.0
    %1166 = vmatpush1.msra.mxu0 0.0
    %1167 = vmatprep.subr.mxu0 0.0
    %1168 = vmatpush1.msra.mxu0 0.0
    %1169 = vmatprep.subr.mxu0 0.0
    %1170 = vmatpush1.msra.mxu0 0.0
    %1171 = vmatprep.subr.mxu0 0.0
    %1172 = vmatpush1.msra.mxu0 0.0
    %1173 = vmatprep.subr.mxu0 0.0
    %1174 = vmatpush1.msra.mxu0 0.0
    %1175 = vmatprep.subr.mxu0 0.0
    %1176 = vmatpush1.msra.mxu0 0.0
    %1177 = vmatprep.subr.mxu0 0.0
    %1178 = vmatpush1.msra.mxu0 0.0
    %1179 = vmatprep.subr.mxu0 0.0
    %1180 = vmatpush1.msra.mxu0 0.0
    %1181 = vmatprep.subr.mxu0 0.0
    %1182 = vmatpush1.msra.mxu0 0.0
    %1183 = vmatprep.mubr.f32.mxu0 0.0
    %1184 = vmatmul.mubr.f32.gmra.mrb[0].mxu0 %v1102
    %v1185 = vpop.f32.mrb[0].mxu0
    %v1186 = vadd.f32 %v1078, %v1185
    %v1187 = vpop.f32.mrb[0].mxu0
    %1188 = vmatprep.mubr.f32.mxu0 0.0
    %1189 = vmatmul.mubr.f32.gmra.mrb[0].mxu0 %v1105
    %v1190 = vpop.f32.mrb[0].mxu0
    %v1191 = vadd.f32 %v1083, %v1190
    %v1192 = vpop.f32.mrb[0].mxu0
    %1193 = vmatprep.mubr.f32.mxu0 0.0
    %1194 = vmatmul.mubr.f32.gmra.mrb[0].mxu0 %v1108
    %v1195 = vpop.f32.mrb[0].mxu0
    %v1196 = vadd.f32 %v1088, %v1195
    %v1197 = vpop.f32.mrb[0].mxu0
    %1198 = vmatprep.mubr.f32.mxu0 0.0
    %1199 = vmatmul.mubr.f32.gmra.mrb[0].mxu0 %v1111
    %v1200 = vpop.f32.mrb[0].mxu0
    %v1201 = vadd.f32 %v1093, %v1200
    %v1202 = vpop.f32.mrb[0].mxu0
    %1203 = vmatprep.mubr.f32.mxu0 0.0
    %1204 = vmatmul.mubr.f32.gmra.mrb[0].mxu0 %v1114
    %v1205 = vpop.f32.mrb[0].mxu0
    %v1206 = vadd.f32 %v1098, %v1205
    %v1207 = vpop.f32.mrb[0].mxu0
    %1208 = vdwg.mxu0
    %v1209 = vtanh.pop %v1186
    %v1210 = vtanh.pop %v1191
    %v1211 = vtanh.pop %v1196
    %v1212 = vtanh.pop %v1201
    %v1213 = vtanh.pop %v1206
    %v1214 = vld [vmem:[%s12] sm:$0xff]
    %v1215 = vld [vmem:[%s12 + $0x8] sm:$0xff]
    %v1216 = vld [vmem:[%s12 + $0x10] sm:$0xf]
    %v1217 = vld [vmem:[%s13] sm:$0xff]
    %v1218 = vld [vmem:[%s13 + $0x8] sm:$0xff]
    %v1219 = vld [vmem:[%s13 + $0x10] sm:$0xf]
    %1221 = vset.pattern.permute.xlu0 0
    %1222 = vperm.xlu0 %1221, %v1217
    %v1223 = vpop.permute.xlu0 %1222
    %1226 = vset.pattern.permute.xlu0 0
    %1227 = vperm.xlu0 %1226, %v1218
    %v1228 = vpop.permute.xlu0 %1227
    %1231 = vset.pattern.permute.xlu0 0
    %1232 = vperm.xlu0 %1231, %v1219
    %v1233 = vpop.permute.xlu0 %1232
    %vm1235 = vcmask 326656
    %v1237 = vsel %vm1235, %v1214, 0
    %v1240 = vsel %vm1235, %v1215, 0
    %v1243 = vsel %vm1235, %v1216, 0
    %1245 = vmatprep.subr.mxu0 0.0
    %1246 = vmatpush1.msra.mxu0 %v1209
    %1247 = vmatprep.subr.mxu0 0.0
    %1248 = vmatpush1.msra.mxu0 %v1210
    %1249 = vmatprep.subr.mxu0 0.0
    %1250 = vmatpush1.msra.mxu0 %v1211
    %1251 = vmatprep.subr.mxu0 0.0
    %1252 = vmatpush1.msra.mxu0 %v1212
    %1253 = vmatprep.subr.mxu0 0.0
    %1254 = vmatpush1.msra.mxu0 %v1213
    %1255 = vmatprep.subr.mxu0 0.0
    %1256 = vmatpush1.msra.mxu0 0.0
    %1257 = vmatprep.subr.mxu0 0.0
    %1258 = vmatpush1.msra.mxu0 0.0
    %1259 = vmatprep.subr.mxu0 0.0
    %1260 = vmatpush1.msra.mxu0 0.0
    %1261 = vmatprep.subr.mxu0 0.0
    %1262 = vmatpush1.msra.mxu0 0.0
    %1263 = vmatprep.subr.mxu0 0.0
    %1264 = vmatpush1.msra.mxu0 0.0
    %1265 = vmatprep.subr.mxu0 0.0
    %1266 = vmatpush1.msra.mxu0 0.0
    %1267 = vmatprep.subr.mxu0 0.0
    %1268 = vmatpush1.msra.mxu0 0.0
    %1269 = vmatprep.subr.mxu0 0.0
    %1270 = vmatpush1.msra.mxu0 0.0
    %1271 = vmatprep.subr.mxu0 0.0
    %1272 = vmatpush1.msra.mxu0 0.0
    %1273 = vmatprep.subr.mxu0 0.0
    %1274 = vmatpush1.msra.mxu0 0.0
    %1275 = vmatprep.subr.mxu0 0.0
    %1276 = vmatpush1.msra.mxu0 0.0
    %1277 = vmatprep.subr.mxu0 0.0
    %1278 = vmatpush1.msra.mxu0 0.0
    %1279 = vmatprep.subr.mxu0 0.0
    %1280 = vmatpush1.msra.mxu0 0.0
    %1281 = vmatprep.subr.mxu0 0.0
    %1282 = vmatpush1.msra.mxu0 0.0
    %1283 = vmatprep.subr.mxu0 0.0
    %1284 = vmatpush1.msra.mxu0 0.0
    %1285 = vmatprep.subr.mxu0 0.0
    %1286 = vmatpush1.msra.mxu0 0.0
    %1287 = vmatprep.subr.mxu0 0.0
    %1288 = vmatpush1.msra.mxu0 0.0
    %1289 = vmatprep.subr.mxu0 0.0
    %1290 = vmatpush1.msra.mxu0 0.0
    %1291 = vmatprep.subr.mxu0 0.0
    %1292 = vmatpush1.msra.mxu0 0.0
    %1293 = vmatprep.subr.mxu0 0.0
    %1294 = vmatpush1.msra.mxu0 0.0
    %1295 = vmatprep.subr.mxu0 0.0
    %1296 = vmatpush1.msra.mxu0 0.0
    %1297 = vmatprep.subr.mxu0 0.0
    %1298 = vmatpush1.msra.mxu0 0.0
    %1299 = vmatprep.subr.mxu0 0.0
    %1300 = vmatpush1.msra.mxu0 0.0
    %1301 = vmatprep.subr.mxu0 0.0
    %1302 = vmatpush1.msra.mxu0 0.0
    %1303 = vmatprep.subr.mxu0 0.0
    %1304 = vmatpush1.msra.mxu0 0.0
    %1305 = vmatprep.subr.mxu0 0.0
    %1306 = vmatpush1.msra.mxu0 0.0
    %1307 = vmatprep.subr.mxu0 0.0
    %1308 = vmatpush1.msra.mxu0 0.0
    %1309 = vmatprep.mubr.f32.mxu0 0.0
    %1310 = vmatmul.mubr.f32.gmra.mrb[0].mxu0 %v1237
    %v1311 = vpop.f32.mrb[0].mxu0
    %v1312 = vadd.f32 %v1223, %v1311
    %v1313 = vpop.f32.mrb[0].mxu0
    %1314 = vmatprep.mubr.f32.mxu0 0.0
    %1315 = vmatmul.mubr.f32.gmra.mrb[0].mxu0 %v1240
    %v1316 = vpop.f32.mrb[0].mxu0
    %v1317 = vadd.f32 %v1228, %v1316
    %v1318 = vpop.f32.mrb[0].mxu0
    %1319 = vmatprep.mubr.f32.mxu0 0.0
    %1320 = vmatmul.mubr.f32.gmra.mrb[0].mxu0 %v1243
    %v1321 = vpop.f32.mrb[0].mxu0
    %v1322 = vadd.f32 %v1233, %v1321
    %v1323 = vpop.f32.mrb[0].mxu0
    %1324 = vdwg.mxu0
    %v1325 = vtanh.pop %v1312
    %v1326 = vtanh.pop %v1317
    %v1327 = vtanh.pop %v1322
    %v1328 = vld [vmem:[%s14] sm:$0x1]
    %v1329 = vld [vmem:[#allocation4] sm:$0x1]
    %1331 = vset.pattern.permute.xlu0 0
    %1332 = vperm.xlu0 %1331, %v1329
    %v1333 = vpop.permute.xlu0 %1332
    %v1335 = vlaneseq
    %v1336 = vshrl.u32 %v1335, 7
    %v1337 = vsub.s32 0, %v1336
    %v1338 = vrot.slane %v1333, %v1337
    %vm1339 = vcmask 162816
    %v1341 = vsel %vm1339, %v1328, 0
    %v1344 = vsel %vm742, %v1327, 0
    %1346 = vmatprep.subr.mxu0 0.0
    %1347 = vmatpush1.msra.mxu0 %v1325
    %1348 = vmatprep.subr.mxu0 0.0
    %1349 = vmatpush1.msra.mxu0 %v1326
    %1350 = vmatprep.subr.mxu0 0.0
    %1351 = vmatpush1.msra.mxu0 %v1344
    %1352 = vmatprep.subr.mxu0 0.0
    %1353 = vmatpush1.msra.mxu0 0.0
    %1354 = vmatprep.subr.mxu0 0.0
    %1355 = vmatpush1.msra.mxu0 0.0
    %1356 = vmatprep.subr.mxu0 0.0
    %1357 = vmatpush1.msra.mxu0 0.0
    %1358 = vmatprep.subr.mxu0 0.0
    %1359 = vmatpush1.msra.mxu0 0.0
    %1360 = vmatprep.subr.mxu0 0.0
    %1361 = vmatpush1.msra.mxu0 0.0
    %1362 = vmatprep.subr.mxu0 0.0
    %1363 = vmatpush1.msra.mxu0 0.0
    %1364 = vmatprep.subr.mxu0 0.0
    %1365 = vmatpush1.msra.mxu0 0.0
    %1366 = vmatprep.subr.mxu0 0.0
    %1367 = vmatpush1.msra.mxu0 0.0
    %1368 = vmatprep.subr.mxu0 0.0
    %1369 = vmatpush1.msra.mxu0 0.0
    %1370 = vmatprep.subr.mxu0 0.0
    %1371 = vmatpush1.msra.mxu0 0.0
    %1372 = vmatprep.subr.mxu0 0.0
    %1373 = vmatpush1.msra.mxu0 0.0
    %1374 = vmatprep.subr.mxu0 0.0
    %1375 = vmatpush1.msra.mxu0 0.0
    %1376 = vmatprep.subr.mxu0 0.0
    %1377 = vmatpush1.msra.mxu0 0.0
    %1378 = vmatprep.subr.mxu0 0.0
    %1379 = vmatpush1.msra.mxu0 0.0
    %1380 = vmatprep.subr.mxu0 0.0
    %1381 = vmatpush1.msra.mxu0 0.0
    %1382 = vmatprep.subr.mxu0 0.0
    %1383 = vmatpush1.msra.mxu0 0.0
    %1384 = vmatprep.subr.mxu0 0.0
    %1385 = vmatpush1.msra.mxu0 0.0
    %1386 = vmatprep.subr.mxu0 0.0
    %1387 = vmatpush1.msra.mxu0 0.0
    %1388 = vmatprep.subr.mxu0 0.0
    %1389 = vmatpush1.msra.mxu0 0.0
    %1390 = vmatprep.subr.mxu0 0.0
    %1391 = vmatpush1.msra.mxu0 0.0
    %1392 = vmatprep.subr.mxu0 0.0
    %1393 = vmatpush1.msra.mxu0 0.0
    %1394 = vmatprep.subr.mxu0 0.0
    %1395 = vmatpush1.msra.mxu0 0.0
    %1396 = vmatprep.subr.mxu0 0.0
    %1397 = vmatpush1.msra.mxu0 0.0
    %1398 = vmatprep.subr.mxu0 0.0
    %1399 = vmatpush1.msra.mxu0 0.0
    %1400 = vmatprep.subr.mxu0 0.0
    %1401 = vmatpush1.msra.mxu0 0.0
    %1402 = vmatprep.subr.mxu0 0.0
    %1403 = vmatpush1.msra.mxu0 0.0
    %1404 = vmatprep.subr.mxu0 0.0
    %1405 = vmatpush1.msra.mxu0 0.0
    %1406 = vmatprep.subr.mxu0 0.0
    %1407 = vmatpush1.msra.mxu0 0.0
    %1408 = vmatprep.subr.mxu0 0.0
    %1409 = vmatpush1.msra.mxu0 0.0
    %1410 = vmatprep.mubr.f32.mxu0 0.0
    %1411 = vmatmul.mubr.f32.gmra.mrb[0].mxu0 %v1341
    %v1412 = vpop.f32.mrb[0].mxu0
    %v1413 = vadd.f32 %v1338, %v1412
    %v1414 = vpop.f32.mrb[0].mxu0
    %1415 = vdwg.mxu0
    %v1416 = vtanh.pop %v1413
    %s1417 = sld [smem:[#allocation3]]
    %s1418 = sld [smem:[#allocation3 + $0x1]]
    %v1419 = vstv %s1417
    %v1420 = vmul.f32 %v1416, %v1419
    %v1421 = vstv %s1418
    %v1422 = vadd.f32 %v1420, %v1421
    %1423 = vst [vmem:[#allocation5] sm:$0x1] %v1422
    // Predicated region
    $region62: #{tpu_custom_call.1} parent=1 // pred_check
      _
    $region63: #{tpu_custom_call.1} parent=1 // pred_check_branch
      %1425 = sbr.rel (0) target = $region65
    $region64: #{tpu_custom_call.1} parent=1 // pred_region
      %s1427 = ssub.s32 16, 16
      %1428 = vsyncadd [#allocation6], %s1427
      %s1430 = sshll.u32 [#allocation5], 4
      %s1431 = int_to_ptr.vmem [resolvable:$true] %s1430
      %1433 = dma.vmem_to_hbm [thread:$0]  %s1431, 16, %s16, [#allocation6]
    $region65: #{tpu_custom_call.1} parent=1 // pred_fallthru
      _
    // Predicated region
    $region66: #{tpu_custom_call.1} parent=1 // pred_check
      _
    $region67: #{tpu_custom_call.1} parent=1 // pred_check_branch
      %1435 = sbr.rel (0) target = $region69
    $region68: #{tpu_custom_call.1} parent=1 // pred_region
      %1436 = dma.done [#allocation6], 16
    $region69: #{tpu_custom_call.1} parent=1 // pred_fallthru
      _
    %1437 = vsyncpa [#allocation6], 1

</llo_original>
